<compile_context>
chip_gen: v6e
topology: v6e:2x2x1
jax: 0.10.0
libtpu: 0.0.40
codegen_flags: <defaults>
</compile_context>

<pallas_src>
import math

import jax
import jax.numpy as jnp
from jax.experimental import pallas as pl
from jax.experimental.pallas import tpu as pltpu


# --------------------------------------------------------------------------
# Trace-time hardware queries (with conservative fallbacks).
# --------------------------------------------------------------------------
def _tpu_vmem_capacity_bytes():
    try:
        info = pltpu.get_tpu_info()
        v = int(getattr(info, "vmem_capacity_bytes"))
        if v > 0:
            return v
    except Exception:
        pass
    return 64 * 1024 * 1024  # conservative: v7x per-TC VMEM


def _num_tensorcores():
    try:
        info = pltpu.get_tpu_info()
        for name in ("num_tensorcores", "tensorcores_per_chip", "num_cores",
                     "cores_per_chip"):
            try:
                v = int(getattr(info, name))
                if v > 0:
                    return v
            except (TypeError, ValueError, AttributeError):
                continue
    except Exception:
        pass
    try:
        v = int(getattr(jax.devices()[0], "num_cores"))
        if v > 0:
            return v
    except Exception:
        pass
    return 1


# --------------------------------------------------------------------------
# Block-size selection.
# --------------------------------------------------------------------------
def _choose_blocks(B, N, d_in, d_out, itemsize, budget_bytes, num_cores):
    """Pick (T, TN): token-block and d_out-block sizes.

    TPU (8,128) constraints: T % 8 == 0 or T == N; TN % 128 == 0 or TN == d_out.
    Footprint per grid step = double-buffered x/w/bias/out blocks + live f32
    einsum accumulator (x2 slack for compiler temporaries).
    """

    def footprint(T, TN):
        blocks = 2 * itemsize * (B * T * d_in + T * d_in * TN + T * TN + B * T * TN)
        acc = 2 * (4 * B * T * TN)
        return blocks + acc

    # -- first try: full d_out per step; maximize the token block T ----------
    per_token_full = footprint(1, d_out)
    t_max = budget_bytes // max(per_token_full, 1)

    if t_max >= N:
        T, TN = N, d_out
    elif t_max >= 8:
        T, TN = (t_max // 8) * 8, d_out
    else:
        # Per-token weight slab (d_in * d_out) too big for the budget even at
        # T=8: split d_out with a second "parallel" grid axis instead
        # (lane-dense 128-multiple output tiles, no accumulator needed).
        T = N if N < 8 else 8
        if d_out <= 128:
            TN = d_out
            # TODO(synk): if even (T=8, d_in, d_out<=128) blows VMEM, add an
            # inner "arbitrary" d_in reduction axis with an f32 VMEM scratch.
        else:
            fixed = 2 * itemsize * B * T * d_in
            per_tn = 2 * itemsize * (T * d_in + T + B * T) + 8 * B * T
            tn_max = (budget_bytes - fixed) // max(per_tn, 1)
            TN = max((tn_max // 128) * 128, 128)
            TN = min(TN, d_out)
            # TODO(synk): if even (8, d_in, 128) blows VMEM, add an inner
            # "arbitrary" d_in reduction axis with an f32 VMEM scratch.

    # -- multi-TensorCore parts only: ensure >= num_cores grid steps so the
    #    dominant weight stream is sharded across cores; only split when the
    #    token blocks come out equal-sized and 8-aligned. ----------------------
    if num_cores >= 2:
        steps = pl.cdiv(N, T) * pl.cdiv(d_out, TN)
        if steps < num_cores and N % (8 * num_cores) == 0 and N // num_cores >= 8:
            T = N // num_cores

    return T, TN


# --------------------------------------------------------------------------
# Kernels.
# --------------------------------------------------------------------------
def _nlinear_kernel_bias(x_ref, w_ref, b_ref, o_ref):
    # x_ref: (B, T, d_in)  w_ref: (T, d_in, TN)  b_ref: (T, TN)  o_ref: (B, T, TN)
    w = w_ref[...]
    if jnp.dtype(w.dtype).itemsize == 1:
        # fp8-streamed weights (v7x option): upcast for a portable MXU path.
        # TODO(synk): feed the v7x MXU fp8 path directly instead of upcasting.
        w = w.astype(jnp.bfloat16)
    acc = jnp.einsum("bti,tio->bto", x_ref[...], w,
                     preferred_element_type=jnp.float32)
    acc = acc + b_ref[...].astype(jnp.float32)[None, :, :]
    o_ref[...] = acc.astype(o_ref.dtype)


def _nlinear_kernel_nobias(x_ref, w_ref, o_ref):
    w = w_ref[...]
    if jnp.dtype(w.dtype).itemsize == 1:
        w = w.astype(jnp.bfloat16)
    acc = jnp.einsum("bti,tio->bto", x_ref[...], w,
                     preferred_element_type=jnp.float32)
    o_ref[...] = acc.astype(o_ref.dtype)


# --------------------------------------------------------------------------
# Public wrapper.
# --------------------------------------------------------------------------
def nlinear(x, weight, bias=None):
    """NLinear forward: out[b,n,o] = sum_i x[b,n,i] * weight[n,i,o] (+ bias[n,o]).

    x: (B, N, d_in); weight: (N, d_in, d_out); bias: (N, d_out) or None.
    To halve the dominant (weight) HBM stream, store `weight` persistently in
    bf16 (or fp8 on v7x) and pass it as-is; this function never casts the
    weight per call.  Accumulation is always f32; output keeps x's dtype.
    """
    if x.ndim != 3:
        raise ValueError("x must have shape (batch, n_tokens, d_in)")
    B, N, d_in = x.shape
    wN, wdi, d_out = weight.shape
    if wN != N or wdi != d_in:
        raise ValueError("weight must be (n_tokens, d_in, d_out) matching x")
    out_dtype = x.dtype

    itemsize = max(jnp.dtype(x.dtype).itemsize, jnp.dtype(weight.dtype).itemsize)

    vmem = _tpu_vmem_capacity_bytes()
    # ~40% of VMEM for the working set, ~78% as the scoped limit:
    #   128 MiB (v5e/v6e) -> ~51 MiB blocks / ~100 MiB limit
    #    64 MiB (v7x)     -> ~25 MiB blocks /  ~50 MiB limit
    block_budget = int(vmem * 0.40)
    vmem_limit = int(vmem * 0.78)

    num_cores = _num_tensorcores()
    T, TN = _choose_blocks(B, N, d_in, d_out, itemsize, block_budget, num_cores)

    # Grid: (token tiles, d_out tiles); d_out axis innermost so the x block
    # index is unchanged across it (no re-fetch of x per d_out tile).
    grid = (pl.cdiv(N, T), pl.cdiv(d_out, TN))

    x_spec = pl.BlockSpec((B, T, d_in), lambda t, n: (0, t, 0))
    w_spec = pl.BlockSpec((T, d_in, TN), lambda t, n: (t, 0, n))
    o_spec = pl.BlockSpec((B, T, TN), lambda t, n: (0, t, n))
    # TODO(synk): if real workloads have d_out < 128 and a bundle dump shows the
    # store slot binding, present a lane-dense (B, T*d_out) output instead of
    # masked partial stores.

    cparams = pltpu.CompilerParams(
        dimension_semantics=("parallel", "parallel"),
        vmem_limit_bytes=vmem_limit,
    )

    if bias is not None:
        b_spec = pl.BlockSpec((T, TN), lambda t, n: (t, n))
        return pl.pallas_call(
            _nlinear_kernel_bias,
            out_shape=jax.ShapeDtypeStruct((B, N, d_out), out_dtype),
            grid_spec=pltpu.PrefetchScalarGridSpec(
                num_scalar_prefetch=0,
                grid=grid,
                in_specs=[x_spec, w_spec, b_spec],
                out_specs=o_spec,
            ),
            compiler_params=cparams,
        )(x, weight, bias)

    return pl.pallas_call(
        _nlinear_kernel_nobias,
        out_shape=jax.ShapeDtypeStruct((B, N, d_out), out_dtype),
        grid_spec=pltpu.PrefetchScalarGridSpec(
            num_scalar_prefetch=0,
            grid=grid,
            in_specs=[x_spec, w_spec],
            out_specs=o_spec,
        ),
        compiler_params=cparams,
    )(x, weight)


if __name__ == "__main__":
    key = jax.random.PRNGKey(0)
    k_x, k_w, k_b = jax.random.split(key, 3)

    B, N, D_IN, D_OUT = 2, 8, 32, 16
    bound = 1.0 / math.sqrt(D_IN)

    x = jax.random.normal(k_x, (B, N, D_IN), dtype=jnp.float32)
    weight = jax.random.uniform(k_w, (N, D_IN, D_OUT), dtype=jnp.float32,
                                minval=-bound, maxval=bound)
    bias = jax.random.uniform(k_b, (N, D_OUT), dtype=jnp.float32,
                              minval=-bound, maxval=bound)

    # bias variant
    out = nlinear(x, weight, bias)
    out = jax.block_until_ready(out)
    ref = jnp.einsum("bni,nio->bno", x, weight) + bias[None]
    assert out.shape == (B, N, D_OUT)
    assert jnp.allclose(out, ref, atol=1e-5, rtol=1e-5)

    # no-bias variant (3-ref kernel path)
    out_nb = jax.block_until_ready(nlinear(x, weight, None))
    ref_nb = jnp.einsum("bni,nio->bno", x, weight)
    assert jnp.allclose(out_nb, ref_nb, atol=1e-5, rtol=1e-5)

    print("KERNEL_OK")
</pallas_src>

<mosaic_0001>
module attributes {stable_mosaic.version = 11 : i64} {
  func.func @_nlinear_kernel_bias(%arg0: i32, %arg1: i32, %arg2: memref<2x8x32xf32, #tpu.memory_space<vmem>>, %arg3: memref<8x32x16xf32, #tpu.memory_space<vmem>>, %arg4: memref<8x16xf32, #tpu.memory_space<vmem>>, %arg5: memref<2x8x16xf32, #tpu.memory_space<vmem>>) attributes {dimension_semantics = [#tpu.dimension_semantics<parallel>, #tpu.dimension_semantics<parallel>], iteration_bounds = array<i64: 1, 1>, scalar_prefetch = 0 : i64, scratch_operands = 0 : i64, tpu.core_type = #tpu.core_type<tc>, window_params = [{transform_indices = @transform_0, window_bounds = array<i64: 2, 8, 32>}, {transform_indices = @transform_1, window_bounds = array<i64: 8, 32, 16>}, {transform_indices = @transform_2, window_bounds = array<i64: 8, 16>}, {transform_indices = @transform_3, window_bounds = array<i64: 2, 8, 16>}]} {
    %c0 = arith.constant 0 : index
    %c0_0 = arith.constant 0 : index
    %c0_1 = arith.constant 0 : index
    %0 = vector.load %arg3[%c0, %c0_0, %c0_1] : memref<8x32x16xf32, #tpu.memory_space<vmem>>, vector<8x32x16xf32>
    %c0_2 = arith.constant 0 : index
    %c0_3 = arith.constant 0 : index
    %c0_4 = arith.constant 0 : index
    %1 = vector.load %arg2[%c0_2, %c0_3, %c0_4] : memref<2x8x32xf32, #tpu.memory_space<vmem>>, vector<2x8x32xf32>
    "tpu.trace_start"() <{level = 10 : i32, message = "bti,tio->bto"}> : () -> ()
    %cst = arith.constant dense<0.000000e+00> : vector<8x16x2xf32>
    %2 = tpu.matmul %0, %1, %cst {dimension_numbers = #tpu.dot_dimension_numbers<[1], [2], [2], [0], [0, 0, 0, 2, 1, 0], [0], [1]>} : vector<8x32x16xf32>, vector<2x8x32xf32>, vector<8x16x2xf32> -> vector<8x16x2xf32>
    %3 = tpu.transpose %2, [2, 0, 1] : vector<8x16x2xf32> -> vector<2x8x16xf32>
    "tpu.trace_stop"() : () -> ()
    %c0_5 = arith.constant 0 : index
    %c0_6 = arith.constant 0 : index
    %4 = vector.load %arg4[%c0_5, %c0_6] : memref<8x16xf32, #tpu.memory_space<vmem>>, vector<8x16xf32>
    %5 = vector.shape_cast %4 : vector<8x16xf32> to vector<1x8x16xf32>
    %6 = vector.broadcast %5 : vector<1x8x16xf32> to vector<2x8x16xf32>
    %7 = arith.addf %3, %6 : vector<2x8x16xf32>
    %c0_7 = arith.constant 0 : index
    %c0_8 = arith.constant 0 : index
    %c0_9 = arith.constant 0 : index
    %8 = vector.load %arg5[%c0_7, %c0_8, %c0_9] : memref<2x8x16xf32, #tpu.memory_space<vmem>>, vector<2x8x16xf32>
    tpu.vector_store %arg5[%c0_7, %c0_8, %c0_9], %7 {strides = array<i32>} : memref<2x8x16xf32, #tpu.memory_space<vmem>>, vector<2x8x16xf32>,
    return
  }
  func.func @transform_0(%arg0: i32, %arg1: i32) -> (i32, i32, i32) {
    %c0_i32 = arith.constant 0 : i32
    %c0_i32_0 = arith.constant 0 : i32
    %c0_i32_1 = arith.constant 0 : i32
    return %c0_i32, %arg0, %c0_i32_0 : i32, i32, i32
  }
  func.func @transform_1(%arg0: i32, %arg1: i32) -> (i32, i32, i32) {
    %c0_i32 = arith.constant 0 : i32
    %c0_i32_0 = arith.constant 0 : i32
    return %arg0, %c0_i32, %arg1 : i32, i32, i32
  }
  func.func @transform_2(%arg0: i32, %arg1: i32) -> (i32, i32) {
    %c0_i32 = arith.constant 0 : i32
    return %arg0, %arg1 : i32, i32
  }
  func.func @transform_3(%arg0: i32, %arg1: i32) -> (i32, i32, i32) {
    %c0_i32 = arith.constant 0 : i32
    %c0_i32_0 = arith.constant 0 : i32
    return %c0_i32, %arg0, %arg1 : i32, i32, i32
  }
}

</mosaic_0001>

<llo_original>
// kernel: tpu_custom_call.1
$region0: #{tpu_custom_call.1}
  #allocation0 [shape = 'u32[]', space=smem, size = 0x4, offset = 0x4, fixed_abs, tag = 'smem constant byte address 0x4 - core index']
  #allocation1 [shape = 'u32[144,128]{1,0:T(1,128)}', space=vmem, size = 0x12000, scoped, tag = 'internal scratch']
  %s0 = inlined_call_operand.vmem [shape: f32[2,8,32], index: 0, kind: input, shape index: {}]
  %s1 = inlined_call_operand.vmem [shape: f32[8,32,16], index: 1, kind: input, shape index: {}]
  %s2 = inlined_call_operand.vmem [shape: f32[8,16], index: 2, kind: input, shape index: {}]
  %s3 = inlined_call_operand.hbm [shape: f32[2,8,16], index: 3, kind: output, shape index: {}]
  %s4 = sld [smem:[#allocation0]]
  $region22: #{tpu_custom_call.1} parent=0
    _
  %s6 = ssub.s32 1, %s4
  %s7 = scalar_select 0, %s6, %s4
  $region1: #{tpu_custom_call.1} parent=0
    #allocation2 [shape = 'u8[8192]{0}', space=vmem, size = 0x2000, scoped, tag = 'output window, operand 0, single buffered']
    #allocation3 [shape = 's32[1]{0}', space=sflag, size = 0x4, scoped, tag = 'scoped memory for tpu_custom_call.1']
    %8 = vsyncpa [#allocation3], 0
    // Predicated region
    $region2: #{tpu_custom_call.1} parent=1 // pred_check
      _
    $region3: #{tpu_custom_call.1} parent=1 // pred_check_branch
      %10 = sbr.rel (0) target = $region5
    $region4: #{tpu_custom_call.1} parent=1 // pred_region
      _
    $region5: #{tpu_custom_call.1} parent=1 // pred_fallthru
      _
    // Predicated region
    $region6: #{tpu_custom_call.1} parent=1 // pred_check
      _
    $region7: #{tpu_custom_call.1} parent=1 // pred_check_branch
      %12 = sbr.rel (0) target = $region9
    $region8: #{tpu_custom_call.1} parent=1 // pred_region
      _
    $region9: #{tpu_custom_call.1} parent=1 // pred_fallthru
      _
    // Predicated region
    $region10: #{tpu_custom_call.1} parent=1 // pred_check
      _
    $region11: #{tpu_custom_call.1} parent=1 // pred_check_branch
      %14 = sbr.rel (0) target = $region13
    $region12: #{tpu_custom_call.1} parent=1 // pred_region
      _
    $region13: #{tpu_custom_call.1} parent=1 // pred_fallthru
      _
    %v15 = vld [vmem:[%s1] sm:$0xff]
    %v16 = vld [vmem:[%s1 + $0x8] sm:$0xff]
    %v17 = vld [vmem:[%s1 + $0x10] sm:$0xff]
    %v18 = vld [vmem:[%s1 + $0x18] sm:$0xff]
    %v19 = vld [vmem:[%s1 + $0x20] sm:$0xff]
    %v20 = vld [vmem:[%s1 + $0x28] sm:$0xff]
    %v21 = vld [vmem:[%s1 + $0x30] sm:$0xff]
    %v22 = vld [vmem:[%s1 + $0x38] sm:$0xff]
    %v23 = vld [vmem:[%s1 + $0x40] sm:$0xff]
    %v24 = vld [vmem:[%s1 + $0x48] sm:$0xff]
    %v25 = vld [vmem:[%s1 + $0x50] sm:$0xff]
    %v26 = vld [vmem:[%s1 + $0x58] sm:$0xff]
    %v27 = vld [vmem:[%s1 + $0x60] sm:$0xff]
    %v28 = vld [vmem:[%s1 + $0x68] sm:$0xff]
    %v29 = vld [vmem:[%s1 + $0x70] sm:$0xff]
    %v30 = vld [vmem:[%s1 + $0x78] sm:$0xff]
    %v31 = vld [vmem:[%s1 + $0x80] sm:$0xff]
    %v32 = vld [vmem:[%s1 + $0x88] sm:$0xff]
    %v33 = vld [vmem:[%s1 + $0x90] sm:$0xff]
    %v34 = vld [vmem:[%s1 + $0x98] sm:$0xff]
    %v35 = vld [vmem:[%s1 + $0xa0] sm:$0xff]
    %v36 = vld [vmem:[%s1 + $0xa8] sm:$0xff]
    %v37 = vld [vmem:[%s1 + $0xb0] sm:$0xff]
    %v38 = vld [vmem:[%s1 + $0xb8] sm:$0xff]
    %v39 = vld [vmem:[%s1 + $0xc0] sm:$0xff]
    %v40 = vld [vmem:[%s1 + $0xc8] sm:$0xff]
    %v41 = vld [vmem:[%s1 + $0xd0] sm:$0xff]
    %v42 = vld [vmem:[%s1 + $0xd8] sm:$0xff]
    %v43 = vld [vmem:[%s1 + $0xe0] sm:$0xff]
    %v44 = vld [vmem:[%s1 + $0xe8] sm:$0xff]
    %v45 = vld [vmem:[%s1 + $0xf0] sm:$0xff]
    %v46 = vld [vmem:[%s1 + $0xf8] sm:$0xff]
    %v47 = vld [vmem:[%s0] sm:$0xff]
    %v48 = vld [vmem:[%s0 + $0x8] sm:$0xff]
    %49 = vxpose.xlu0.b32.start [1/16] %v47, 128
    %50 = vxpose.xlu0.b32.cont [2/16] 0.0, 128
    %51 = vxpose.xlu0.b32.cont [3/16] 0.0, 128
    %52 = vxpose.xlu0.b32.cont [4/16] 0.0, 128
    %53 = vxpose.xlu0.b32.cont [5/16] 0.0, 128
    %54 = vxpose.xlu0.b32.cont [6/16] 0.0, 128
    %55 = vxpose.xlu0.b32.cont [7/16] 0.0, 128
    %56 = vxpose.xlu0.b32.cont [8/16] 0.0, 128
    %57 = vxpose.xlu0.b32.cont [9/16] 0.0, 128
    %58 = vxpose.xlu0.b32.cont [10/16] 0.0, 128
    %59 = vxpose.xlu0.b32.cont [11/16] 0.0, 128
    %60 = vxpose.xlu0.b32.cont [12/16] 0.0, 128
    %61 = vxpose.xlu0.b32.cont [13/16] 0.0, 128
    %62 = vxpose.xlu0.b32.cont [14/16] 0.0, 128
    %63 = vxpose.xlu0.b32.cont [15/16] 0.0, 128
    %64 = vxpose.xlu0.b32.end [16/16] 0.0, 128
    %v65 = vpop.trf.xlu0
    %v66 = vpop.trf.xlu0
    %v67 = vpop.trf.xlu0
    %v68 = vpop.trf.xlu0
    %v69 = vpop.trf.xlu0
    %v70 = vpop.trf.xlu0
    %v71 = vpop.trf.xlu0
    %v72 = vpop.trf.xlu0
    %v73 = vpop.trf.xlu0
    %v74 = vpop.trf.xlu0
    %v75 = vpop.trf.xlu0
    %v76 = vpop.trf.xlu0
    %v77 = vpop.trf.xlu0
    %v78 = vpop.trf.xlu0
    %v79 = vpop.trf.xlu0
    %v80 = vpop.trf.xlu0
    %81 = vxpose.xlu0.b32.start [1/16] %v48, 128
    %82 = vxpose.xlu0.b32.cont [2/16] 0.0, 128
    %83 = vxpose.xlu0.b32.cont [3/16] 0.0, 128
    %84 = vxpose.xlu0.b32.cont [4/16] 0.0, 128
    %85 = vxpose.xlu0.b32.cont [5/16] 0.0, 128
    %86 = vxpose.xlu0.b32.cont [6/16] 0.0, 128
    %87 = vxpose.xlu0.b32.cont [7/16] 0.0, 128
    %88 = vxpose.xlu0.b32.cont [8/16] 0.0, 128
    %89 = vxpose.xlu0.b32.cont [9/16] 0.0, 128
    %90 = vxpose.xlu0.b32.cont [10/16] 0.0, 128
    %91 = vxpose.xlu0.b32.cont [11/16] 0.0, 128
    %92 = vxpose.xlu0.b32.cont [12/16] 0.0, 128
    %93 = vxpose.xlu0.b32.cont [13/16] 0.0, 128
    %94 = vxpose.xlu0.b32.cont [14/16] 0.0, 128
    %95 = vxpose.xlu0.b32.cont [15/16] 0.0, 128
    %96 = vxpose.xlu0.b32.end [16/16] 0.0, 128
    %v97 = vpop.trf.xlu0
    %v98 = vpop.trf.xlu0
    %v99 = vpop.trf.xlu0
    %v100 = vpop.trf.xlu0
    %v101 = vpop.trf.xlu0
    %v102 = vpop.trf.xlu0
    %v103 = vpop.trf.xlu0
    %v104 = vpop.trf.xlu0
    %v105 = vpop.trf.xlu0
    %v106 = vpop.trf.xlu0
    %v107 = vpop.trf.xlu0
    %v108 = vpop.trf.xlu0
    %v109 = vpop.trf.xlu0
    %v110 = vpop.trf.xlu0
    %v111 = vpop.trf.xlu0
    %v112 = vpop.trf.xlu0
    %v113 = vcombine.high %v65, 0.0
    %v115 = vunpack.c.l.s4 1983009808
    %v116 = vunpack.c.0.s8 %v115
    %v117 = vlaneseq
    %v118 = vshrl.u32 %v117, 7
    %v119 = vsub.s32 %v116, %v118
    %v120 = vrot.slane %v65, %v119
    %v122 = vunpack.c.l.s4 1983009808
    %v123 = vunpack.c.0.s8 %v122
    %v124 = vlaneseq
    %v125 = vshrl.u32 %v124, 7
    %v126 = vsub.s32 %v123, %v125
    %v127 = vrot.slane %v113, %v126
    %v128 = vcombine.high %v97, 0.0
    %v130 = vunpack.c.l.s4 1983009808
    %v131 = vunpack.c.0.s8 %v130
    %v132 = vlaneseq
    %v133 = vshrl.u32 %v132, 7
    %v134 = vsub.s32 %v131, %v133
    %v135 = vrot.slane %v97, %v134
    %v137 = vunpack.c.l.s4 1983009808
    %v138 = vunpack.c.0.s8 %v137
    %v139 = vlaneseq
    %v140 = vshrl.u32 %v139, 7
    %v141 = vsub.s32 %v138, %v140
    %v142 = vrot.slane %v128, %v141
    %v143 = vcombine.low %v120, %v135
    %v144 = vcombine.high %v120, %v135
    %v146 = vunpack.c.l.s4 1934713408
    %v147 = vunpack.c.0.s8 %v146
    %v148 = vlaneseq
    %v149 = vshrl.u32 %v148, 7
    %v150 = vsub.s32 %v147, %v149
    %v151 = vrot.slane %v143, %v150
    %v153 = vunpack.c.l.s4 1934713408
    %v154 = vunpack.c.0.s8 %v153
    %v155 = vlaneseq
    %v156 = vshrl.u32 %v155, 7
    %v157 = vsub.s32 %v154, %v156
    %v158 = vrot.slane %v144, %v157
    %v159 = vcombine.low %v127, %v142
    %v160 = vcombine.high %v127, %v142
    %v162 = vunpack.c.l.s4 1934713408
    %v163 = vunpack.c.0.s8 %v162
    %v164 = vlaneseq
    %v165 = vshrl.u32 %v164, 7
    %v166 = vsub.s32 %v163, %v165
    %v167 = vrot.slane %v159, %v166
    %v169 = vunpack.c.l.s4 1934713408
    %v170 = vunpack.c.0.s8 %v169
    %v171 = vlaneseq
    %v172 = vshrl.u32 %v171, 7
    %v173 = vsub.s32 %v170, %v172
    %v174 = vrot.slane %v160, %v173
    %v175 = vcombine.high %v151, 0.0
    %v176 = vcombine.high %v158, 0.0
    %v177 = vcombine.high %v167, 0.0
    %v178 = vcombine.high %v174, 0.0
    %v179 = vcombine.high %v66, 0.0
    %v181 = vunpack.c.l.s4 1983009808
    %v182 = vunpack.c.0.s8 %v181
    %v183 = vlaneseq
    %v184 = vshrl.u32 %v183, 7
    %v185 = vsub.s32 %v182, %v184
    %v186 = vrot.slane %v66, %v185
    %v188 = vunpack.c.l.s4 1983009808
    %v189 = vunpack.c.0.s8 %v188
    %v190 = vlaneseq
    %v191 = vshrl.u32 %v190, 7
    %v192 = vsub.s32 %v189, %v191
    %v193 = vrot.slane %v179, %v192
    %v194 = vcombine.high %v98, 0.0
    %v196 = vunpack.c.l.s4 1983009808
    %v197 = vunpack.c.0.s8 %v196
    %v198 = vlaneseq
    %v199 = vshrl.u32 %v198, 7
    %v200 = vsub.s32 %v197, %v199
    %v201 = vrot.slane %v98, %v200
    %v203 = vunpack.c.l.s4 1983009808
    %v204 = vunpack.c.0.s8 %v203
    %v205 = vlaneseq
    %v206 = vshrl.u32 %v205, 7
    %v207 = vsub.s32 %v204, %v206
    %v208 = vrot.slane %v194, %v207
    %v209 = vcombine.low %v186, %v201
    %v210 = vcombine.high %v186, %v201
    %v212 = vunpack.c.l.s4 1934713408
    %v213 = vunpack.c.0.s8 %v212
    %v214 = vlaneseq
    %v215 = vshrl.u32 %v214, 7
    %v216 = vsub.s32 %v213, %v215
    %v217 = vrot.slane %v209, %v216
    %v219 = vunpack.c.l.s4 1934713408
    %v220 = vunpack.c.0.s8 %v219
    %v221 = vlaneseq
    %v222 = vshrl.u32 %v221, 7
    %v223 = vsub.s32 %v220, %v222
    %v224 = vrot.slane %v210, %v223
    %v225 = vcombine.low %v193, %v208
    %v226 = vcombine.high %v193, %v208
    %v228 = vunpack.c.l.s4 1934713408
    %v229 = vunpack.c.0.s8 %v228
    %v230 = vlaneseq
    %v231 = vshrl.u32 %v230, 7
    %v232 = vsub.s32 %v229, %v231
    %v233 = vrot.slane %v225, %v232
    %v235 = vunpack.c.l.s4 1934713408
    %v236 = vunpack.c.0.s8 %v235
    %v237 = vlaneseq
    %v238 = vshrl.u32 %v237, 7
    %v239 = vsub.s32 %v236, %v238
    %v240 = vrot.slane %v226, %v239
    %v241 = vcombine.high %v217, 0.0
    %v242 = vcombine.high %v224, 0.0
    %v243 = vcombine.high %v233, 0.0
    %v244 = vcombine.high %v240, 0.0
    %v245 = vcombine.high %v67, 0.0
    %v247 = vunpack.c.l.s4 1983009808
    %v248 = vunpack.c.0.s8 %v247
    %v249 = vlaneseq
    %v250 = vshrl.u32 %v249, 7
    %v251 = vsub.s32 %v248, %v250
    %v252 = vrot.slane %v67, %v251
    %v254 = vunpack.c.l.s4 1983009808
    %v255 = vunpack.c.0.s8 %v254
    %v256 = vlaneseq
    %v257 = vshrl.u32 %v256, 7
    %v258 = vsub.s32 %v255, %v257
    %v259 = vrot.slane %v245, %v258
    %v260 = vcombine.high %v99, 0.0
    %v262 = vunpack.c.l.s4 1983009808
    %v263 = vunpack.c.0.s8 %v262
    %v264 = vlaneseq
    %v265 = vshrl.u32 %v264, 7
    %v266 = vsub.s32 %v263, %v265
    %v267 = vrot.slane %v99, %v266
    %v269 = vunpack.c.l.s4 1983009808
    %v270 = vunpack.c.0.s8 %v269
    %v271 = vlaneseq
    %v272 = vshrl.u32 %v271, 7
    %v273 = vsub.s32 %v270, %v272
    %v274 = vrot.slane %v260, %v273
    %v275 = vcombine.low %v252, %v267
    %v276 = vcombine.high %v252, %v267
    %v278 = vunpack.c.l.s4 1934713408
    %v279 = vunpack.c.0.s8 %v278
    %v280 = vlaneseq
    %v281 = vshrl.u32 %v280, 7
    %v282 = vsub.s32 %v279, %v281
    %v283 = vrot.slane %v275, %v282
    %v285 = vunpack.c.l.s4 1934713408
    %v286 = vunpack.c.0.s8 %v285
    %v287 = vlaneseq
    %v288 = vshrl.u32 %v287, 7
    %v289 = vsub.s32 %v286, %v288
    %v290 = vrot.slane %v276, %v289
    %v291 = vcombine.low %v259, %v274
    %v292 = vcombine.high %v259, %v274
    %v294 = vunpack.c.l.s4 1934713408
    %v295 = vunpack.c.0.s8 %v294
    %v296 = vlaneseq
    %v297 = vshrl.u32 %v296, 7
    %v298 = vsub.s32 %v295, %v297
    %v299 = vrot.slane %v291, %v298
    %v301 = vunpack.c.l.s4 1934713408
    %v302 = vunpack.c.0.s8 %v301
    %v303 = vlaneseq
    %v304 = vshrl.u32 %v303, 7
    %v305 = vsub.s32 %v302, %v304
    %v306 = vrot.slane %v292, %v305
    %v307 = vcombine.high %v283, 0.0
    %v308 = vcombine.high %v290, 0.0
    %v309 = vcombine.high %v299, 0.0
    %v310 = vcombine.high %v306, 0.0
    %v311 = vcombine.high %v68, 0.0
    %v313 = vunpack.c.l.s4 1983009808
    %v314 = vunpack.c.0.s8 %v313
    %v315 = vlaneseq
    %v316 = vshrl.u32 %v315, 7
    %v317 = vsub.s32 %v314, %v316
    %v318 = vrot.slane %v68, %v317
    %v320 = vunpack.c.l.s4 1983009808
    %v321 = vunpack.c.0.s8 %v320
    %v322 = vlaneseq
    %v323 = vshrl.u32 %v322, 7
    %v324 = vsub.s32 %v321, %v323
    %v325 = vrot.slane %v311, %v324
    %v326 = vcombine.high %v100, 0.0
    %v328 = vunpack.c.l.s4 1983009808
    %v329 = vunpack.c.0.s8 %v328
    %v330 = vlaneseq
    %v331 = vshrl.u32 %v330, 7
    %v332 = vsub.s32 %v329, %v331
    %v333 = vrot.slane %v100, %v332
    %v335 = vunpack.c.l.s4 1983009808
    %v336 = vunpack.c.0.s8 %v335
    %v337 = vlaneseq
    %v338 = vshrl.u32 %v337, 7
    %v339 = vsub.s32 %v336, %v338
    %v340 = vrot.slane %v326, %v339
    %v341 = vcombine.low %v318, %v333
    %v342 = vcombine.high %v318, %v333
    %v344 = vunpack.c.l.s4 1934713408
    %v345 = vunpack.c.0.s8 %v344
    %v346 = vlaneseq
    %v347 = vshrl.u32 %v346, 7
    %v348 = vsub.s32 %v345, %v347
    %v349 = vrot.slane %v341, %v348
    %v351 = vunpack.c.l.s4 1934713408
    %v352 = vunpack.c.0.s8 %v351
    %v353 = vlaneseq
    %v354 = vshrl.u32 %v353, 7
    %v355 = vsub.s32 %v352, %v354
    %v356 = vrot.slane %v342, %v355
    %v357 = vcombine.low %v325, %v340
    %v358 = vcombine.high %v325, %v340
    %v360 = vunpack.c.l.s4 1934713408
    %v361 = vunpack.c.0.s8 %v360
    %v362 = vlaneseq
    %v363 = vshrl.u32 %v362, 7
    %v364 = vsub.s32 %v361, %v363
    %v365 = vrot.slane %v357, %v364
    %v367 = vunpack.c.l.s4 1934713408
    %v368 = vunpack.c.0.s8 %v367
    %v369 = vlaneseq
    %v370 = vshrl.u32 %v369, 7
    %v371 = vsub.s32 %v368, %v370
    %v372 = vrot.slane %v358, %v371
    %v373 = vcombine.high %v349, 0.0
    %v374 = vcombine.high %v356, 0.0
    %v375 = vcombine.high %v365, 0.0
    %v376 = vcombine.high %v372, 0.0
    %377 = vxpose.xlu0.b32.start [1/16] %v151, 128
    %378 = vxpose.xlu0.b32.cont [2/16] 0.0, 128
    %379 = vxpose.xlu0.b32.cont [3/16] 0.0, 128
    %380 = vxpose.xlu0.b32.cont [4/16] 0.0, 128
    %381 = vxpose.xlu0.b32.cont [5/16] 0.0, 128
    %382 = vxpose.xlu0.b32.cont [6/16] 0.0, 128
    %383 = vxpose.xlu0.b32.cont [7/16] 0.0, 128
    %384 = vxpose.xlu0.b32.cont [8/16] 0.0, 128
    %385 = vxpose.xlu0.b32.cont [9/16] 0.0, 128
    %386 = vxpose.xlu0.b32.cont [10/16] 0.0, 128
    %387 = vxpose.xlu0.b32.cont [11/16] 0.0, 128
    %388 = vxpose.xlu0.b32.cont [12/16] 0.0, 128
    %389 = vxpose.xlu0.b32.cont [13/16] 0.0, 128
    %390 = vxpose.xlu0.b32.cont [14/16] 0.0, 128
    %391 = vxpose.xlu0.b32.cont [15/16] 0.0, 128
    %392 = vxpose.xlu0.b32.end [16/16] 0.0, 128
    %v393 = vpop.trf.xlu0
    %v394 = vpop.trf.xlu0
    %v395 = vpop.trf.xlu0
    %v396 = vpop.trf.xlu0
    %v397 = vpop.trf.xlu0
    %v398 = vpop.trf.xlu0
    %v399 = vpop.trf.xlu0
    %v400 = vpop.trf.xlu0
    %v401 = vpop.trf.xlu0
    %v402 = vpop.trf.xlu0
    %v403 = vpop.trf.xlu0
    %v404 = vpop.trf.xlu0
    %v405 = vpop.trf.xlu0
    %v406 = vpop.trf.xlu0
    %v407 = vpop.trf.xlu0
    %v408 = vpop.trf.xlu0
    %409 = vxpose.xlu0.b32.start [1/16] %v175, 128
    %410 = vxpose.xlu0.b32.cont [2/16] 0.0, 128
    %411 = vxpose.xlu0.b32.cont [3/16] 0.0, 128
    %412 = vxpose.xlu0.b32.cont [4/16] 0.0, 128
    %413 = vxpose.xlu0.b32.cont [5/16] 0.0, 128
    %414 = vxpose.xlu0.b32.cont [6/16] 0.0, 128
    %415 = vxpose.xlu0.b32.cont [7/16] 0.0, 128
    %416 = vxpose.xlu0.b32.cont [8/16] 0.0, 128
    %417 = vxpose.xlu0.b32.cont [9/16] 0.0, 128
    %418 = vxpose.xlu0.b32.cont [10/16] 0.0, 128
    %419 = vxpose.xlu0.b32.cont [11/16] 0.0, 128
    %420 = vxpose.xlu0.b32.cont [12/16] 0.0, 128
    %421 = vxpose.xlu0.b32.cont [13/16] 0.0, 128
    %422 = vxpose.xlu0.b32.cont [14/16] 0.0, 128
    %423 = vxpose.xlu0.b32.cont [15/16] 0.0, 128
    %424 = vxpose.xlu0.b32.end [16/16] 0.0, 128
    %v425 = vpop.trf.xlu0
    %v426 = vpop.trf.xlu0
    %v427 = vpop.trf.xlu0
    %v428 = vpop.trf.xlu0
    %v429 = vpop.trf.xlu0
    %v430 = vpop.trf.xlu0
    %v431 = vpop.trf.xlu0
    %v432 = vpop.trf.xlu0
    %v433 = vpop.trf.xlu0
    %v434 = vpop.trf.xlu0
    %v435 = vpop.trf.xlu0
    %v436 = vpop.trf.xlu0
    %v437 = vpop.trf.xlu0
    %v438 = vpop.trf.xlu0
    %v439 = vpop.trf.xlu0
    %v440 = vpop.trf.xlu0
    %441 = vxpose.xlu0.b32.start [1/16] %v158, 128
    %442 = vxpose.xlu0.b32.cont [2/16] 0.0, 128
    %443 = vxpose.xlu0.b32.cont [3/16] 0.0, 128
    %444 = vxpose.xlu0.b32.cont [4/16] 0.0, 128
    %445 = vxpose.xlu0.b32.cont [5/16] 0.0, 128
    %446 = vxpose.xlu0.b32.cont [6/16] 0.0, 128
    %447 = vxpose.xlu0.b32.cont [7/16] 0.0, 128
    %448 = vxpose.xlu0.b32.cont [8/16] 0.0, 128
    %449 = vxpose.xlu0.b32.cont [9/16] 0.0, 128
    %450 = vxpose.xlu0.b32.cont [10/16] 0.0, 128
    %451 = vxpose.xlu0.b32.cont [11/16] 0.0, 128
    %452 = vxpose.xlu0.b32.cont [12/16] 0.0, 128
    %453 = vxpose.xlu0.b32.cont [13/16] 0.0, 128
    %454 = vxpose.xlu0.b32.cont [14/16] 0.0, 128
    %455 = vxpose.xlu0.b32.cont [15/16] 0.0, 128
    %456 = vxpose.xlu0.b32.end [16/16] 0.0, 128
    %v457 = vpop.trf.xlu0
    %v458 = vpop.trf.xlu0
    %v459 = vpop.trf.xlu0
    %v460 = vpop.trf.xlu0
    %v461 = vpop.trf.xlu0
    %v462 = vpop.trf.xlu0
    %v463 = vpop.trf.xlu0
    %v464 = vpop.trf.xlu0
    %v465 = vpop.trf.xlu0
    %v466 = vpop.trf.xlu0
    %v467 = vpop.trf.xlu0
    %v468 = vpop.trf.xlu0
    %v469 = vpop.trf.xlu0
    %v470 = vpop.trf.xlu0
    %v471 = vpop.trf.xlu0
    %v472 = vpop.trf.xlu0
    %473 = vxpose.xlu0.b32.start [1/16] %v176, 128
    %474 = vxpose.xlu0.b32.cont [2/16] 0.0, 128
    %475 = vxpose.xlu0.b32.cont [3/16] 0.0, 128
    %476 = vxpose.xlu0.b32.cont [4/16] 0.0, 128
    %477 = vxpose.xlu0.b32.cont [5/16] 0.0, 128
    %478 = vxpose.xlu0.b32.cont [6/16] 0.0, 128
    %479 = vxpose.xlu0.b32.cont [7/16] 0.0, 128
    %480 = vxpose.xlu0.b32.cont [8/16] 0.0, 128
    %481 = vxpose.xlu0.b32.cont [9/16] 0.0, 128
    %482 = vxpose.xlu0.b32.cont [10/16] 0.0, 128
    %483 = vxpose.xlu0.b32.cont [11/16] 0.0, 128
    %484 = vxpose.xlu0.b32.cont [12/16] 0.0, 128
    %485 = vxpose.xlu0.b32.cont [13/16] 0.0, 128
    %486 = vxpose.xlu0.b32.cont [14/16] 0.0, 128
    %487 = vxpose.xlu0.b32.cont [15/16] 0.0, 128
    %488 = vxpose.xlu0.b32.end [16/16] 0.0, 128
    %v489 = vpop.trf.xlu0
    %v490 = vpop.trf.xlu0
    %v491 = vpop.trf.xlu0
    %v492 = vpop.trf.xlu0
    %v493 = vpop.trf.xlu0
    %v494 = vpop.trf.xlu0
    %v495 = vpop.trf.xlu0
    %v496 = vpop.trf.xlu0
    %v497 = vpop.trf.xlu0
    %v498 = vpop.trf.xlu0
    %v499 = vpop.trf.xlu0
    %v500 = vpop.trf.xlu0
    %v501 = vpop.trf.xlu0
    %v502 = vpop.trf.xlu0
    %v503 = vpop.trf.xlu0
    %v504 = vpop.trf.xlu0
    %505 = vxpose.xlu0.b32.start [1/16] %v167, 128
    %506 = vxpose.xlu0.b32.cont [2/16] 0.0, 128
    %507 = vxpose.xlu0.b32.cont [3/16] 0.0, 128
    %508 = vxpose.xlu0.b32.cont [4/16] 0.0, 128
    %509 = vxpose.xlu0.b32.cont [5/16] 0.0, 128
    %510 = vxpose.xlu0.b32.cont [6/16] 0.0, 128
    %511 = vxpose.xlu0.b32.cont [7/16] 0.0, 128
    %512 = vxpose.xlu0.b32.cont [8/16] 0.0, 128
    %513 = vxpose.xlu0.b32.cont [9/16] 0.0, 128
    %514 = vxpose.xlu0.b32.cont [10/16] 0.0, 128
    %515 = vxpose.xlu0.b32.cont [11/16] 0.0, 128
    %516 = vxpose.xlu0.b32.cont [12/16] 0.0, 128
    %517 = vxpose.xlu0.b32.cont [13/16] 0.0, 128
    %518 = vxpose.xlu0.b32.cont [14/16] 0.0, 128
    %519 = vxpose.xlu0.b32.cont [15/16] 0.0, 128
    %520 = vxpose.xlu0.b32.end [16/16] 0.0, 128
    %v521 = vpop.trf.xlu0
    %v522 = vpop.trf.xlu0
    %v523 = vpop.trf.xlu0
    %v524 = vpop.trf.xlu0
    %v525 = vpop.trf.xlu0
    %v526 = vpop.trf.xlu0
    %v527 = vpop.trf.xlu0
    %v528 = vpop.trf.xlu0
    %v529 = vpop.trf.xlu0
    %v530 = vpop.trf.xlu0
    %v531 = vpop.trf.xlu0
    %v532 = vpop.trf.xlu0
    %v533 = vpop.trf.xlu0
    %v534 = vpop.trf.xlu0
    %v535 = vpop.trf.xlu0
    %v536 = vpop.trf.xlu0
    %537 = vxpose.xlu0.b32.start [1/16] %v177, 128
    %538 = vxpose.xlu0.b32.cont [2/16] 0.0, 128
    %539 = vxpose.xlu0.b32.cont [3/16] 0.0, 128
    %540 = vxpose.xlu0.b32.cont [4/16] 0.0, 128
    %541 = vxpose.xlu0.b32.cont [5/16] 0.0, 128
    %542 = vxpose.xlu0.b32.cont [6/16] 0.0, 128
    %543 = vxpose.xlu0.b32.cont [7/16] 0.0, 128
    %544 = vxpose.xlu0.b32.cont [8/16] 0.0, 128
    %545 = vxpose.xlu0.b32.cont [9/16] 0.0, 128
    %546 = vxpose.xlu0.b32.cont [10/16] 0.0, 128
    %547 = vxpose.xlu0.b32.cont [11/16] 0.0, 128
    %548 = vxpose.xlu0.b32.cont [12/16] 0.0, 128
    %549 = vxpose.xlu0.b32.cont [13/16] 0.0, 128
    %550 = vxpose.xlu0.b32.cont [14/16] 0.0, 128
    %551 = vxpose.xlu0.b32.cont [15/16] 0.0, 128
    %552 = vxpose.xlu0.b32.end [16/16] 0.0, 128
    %v553 = vpop.trf.xlu0
    %v554 = vpop.trf.xlu0
    %v555 = vpop.trf.xlu0
    %v556 = vpop.trf.xlu0
    %v557 = vpop.trf.xlu0
    %v558 = vpop.trf.xlu0
    %v559 = vpop.trf.xlu0
    %v560 = vpop.trf.xlu0
    %v561 = vpop.trf.xlu0
    %v562 = vpop.trf.xlu0
    %v563 = vpop.trf.xlu0
    %v564 = vpop.trf.xlu0
    %v565 = vpop.trf.xlu0
    %v566 = vpop.trf.xlu0
    %v567 = vpop.trf.xlu0
    %v568 = vpop.trf.xlu0
    %569 = vxpose.xlu0.b32.start [1/16] %v174, 128
    %570 = vxpose.xlu0.b32.cont [2/16] 0.0, 128
    %571 = vxpose.xlu0.b32.cont [3/16] 0.0, 128
    %572 = vxpose.xlu0.b32.cont [4/16] 0.0, 128
    %573 = vxpose.xlu0.b32.cont [5/16] 0.0, 128
    %574 = vxpose.xlu0.b32.cont [6/16] 0.0, 128
    %575 = vxpose.xlu0.b32.cont [7/16] 0.0, 128
    %576 = vxpose.xlu0.b32.cont [8/16] 0.0, 128
    %577 = vxpose.xlu0.b32.cont [9/16] 0.0, 128
    %578 = vxpose.xlu0.b32.cont [10/16] 0.0, 128
    %579 = vxpose.xlu0.b32.cont [11/16] 0.0, 128
    %580 = vxpose.xlu0.b32.cont [12/16] 0.0, 128
    %581 = vxpose.xlu0.b32.cont [13/16] 0.0, 128
    %582 = vxpose.xlu0.b32.cont [14/16] 0.0, 128
    %583 = vxpose.xlu0.b32.cont [15/16] 0.0, 128
    %584 = vxpose.xlu0.b32.end [16/16] 0.0, 128
    %v585 = vpop.trf.xlu0
    %v586 = vpop.trf.xlu0
    %v587 = vpop.trf.xlu0
    %v588 = vpop.trf.xlu0
    %v589 = vpop.trf.xlu0
    %v590 = vpop.trf.xlu0
    %v591 = vpop.trf.xlu0
    %v592 = vpop.trf.xlu0
    %v593 = vpop.trf.xlu0
    %v594 = vpop.trf.xlu0
    %v595 = vpop.trf.xlu0
    %v596 = vpop.trf.xlu0
    %v597 = vpop.trf.xlu0
    %v598 = vpop.trf.xlu0
    %v599 = vpop.trf.xlu0
    %v600 = vpop.trf.xlu0
    %601 = vxpose.xlu0.b32.start [1/16] %v178, 128
    %602 = vxpose.xlu0.b32.cont [2/16] 0.0, 128
    %603 = vxpose.xlu0.b32.cont [3/16] 0.0, 128
    %604 = vxpose.xlu0.b32.cont [4/16] 0.0, 128
    %605 = vxpose.xlu0.b32.cont [5/16] 0.0, 128
    %606 = vxpose.xlu0.b32.cont [6/16] 0.0, 128
    %607 = vxpose.xlu0.b32.cont [7/16] 0.0, 128
    %608 = vxpose.xlu0.b32.cont [8/16] 0.0, 128
    %609 = vxpose.xlu0.b32.cont [9/16] 0.0, 128
    %610 = vxpose.xlu0.b32.cont [10/16] 0.0, 128
    %611 = vxpose.xlu0.b32.cont [11/16] 0.0, 128
    %612 = vxpose.xlu0.b32.cont [12/16] 0.0, 128
    %613 = vxpose.xlu0.b32.cont [13/16] 0.0, 128
    %614 = vxpose.xlu0.b32.cont [14/16] 0.0, 128
    %615 = vxpose.xlu0.b32.cont [15/16] 0.0, 128
    %616 = vxpose.xlu0.b32.end [16/16] 0.0, 128
    %v617 = vpop.trf.xlu0
    %v618 = vpop.trf.xlu0
    %v619 = vpop.trf.xlu0
    %v620 = vpop.trf.xlu0
    %v621 = vpop.trf.xlu0
    %v622 = vpop.trf.xlu0
    %v623 = vpop.trf.xlu0
    %v624 = vpop.trf.xlu0
    %v625 = vpop.trf.xlu0
    %v626 = vpop.trf.xlu0
    %v627 = vpop.trf.xlu0
    %v628 = vpop.trf.xlu0
    %v629 = vpop.trf.xlu0
    %v630 = vpop.trf.xlu0
    %v631 = vpop.trf.xlu0
    %v632 = vpop.trf.xlu0
    %633 = vxpose.xlu0.b32.start [1/16] %v217, 128
    %634 = vxpose.xlu0.b32.cont [2/16] 0.0, 128
    %635 = vxpose.xlu0.b32.cont [3/16] 0.0, 128
    %636 = vxpose.xlu0.b32.cont [4/16] 0.0, 128
    %637 = vxpose.xlu0.b32.cont [5/16] 0.0, 128
    %638 = vxpose.xlu0.b32.cont [6/16] 0.0, 128
    %639 = vxpose.xlu0.b32.cont [7/16] 0.0, 128
    %640 = vxpose.xlu0.b32.cont [8/16] 0.0, 128
    %641 = vxpose.xlu0.b32.cont [9/16] 0.0, 128
    %642 = vxpose.xlu0.b32.cont [10/16] 0.0, 128
    %643 = vxpose.xlu0.b32.cont [11/16] 0.0, 128
    %644 = vxpose.xlu0.b32.cont [12/16] 0.0, 128
    %645 = vxpose.xlu0.b32.cont [13/16] 0.0, 128
    %646 = vxpose.xlu0.b32.cont [14/16] 0.0, 128
    %647 = vxpose.xlu0.b32.cont [15/16] 0.0, 128
    %648 = vxpose.xlu0.b32.end [16/16] 0.0, 128
    %v649 = vpop.trf.xlu0
    %v650 = vpop.trf.xlu0
    %v651 = vpop.trf.xlu0
    %v652 = vpop.trf.xlu0
    %v653 = vpop.trf.xlu0
    %v654 = vpop.trf.xlu0
    %v655 = vpop.trf.xlu0
    %v656 = vpop.trf.xlu0
    %v657 = vpop.trf.xlu0
    %v658 = vpop.trf.xlu0
    %v659 = vpop.trf.xlu0
    %v660 = vpop.trf.xlu0
    %v661 = vpop.trf.xlu0
    %v662 = vpop.trf.xlu0
    %v663 = vpop.trf.xlu0
    %v664 = vpop.trf.xlu0
    %665 = vxpose.xlu0.b32.start [1/16] %v241, 128
    %666 = vxpose.xlu0.b32.cont [2/16] 0.0, 128
    %667 = vxpose.xlu0.b32.cont [3/16] 0.0, 128
    %668 = vxpose.xlu0.b32.cont [4/16] 0.0, 128
    %669 = vxpose.xlu0.b32.cont [5/16] 0.0, 128
    %670 = vxpose.xlu0.b32.cont [6/16] 0.0, 128
    %671 = vxpose.xlu0.b32.cont [7/16] 0.0, 128
    %672 = vxpose.xlu0.b32.cont [8/16] 0.0, 128
    %673 = vxpose.xlu0.b32.cont [9/16] 0.0, 128
    %674 = vxpose.xlu0.b32.cont [10/16] 0.0, 128
    %675 = vxpose.xlu0.b32.cont [11/16] 0.0, 128
    %676 = vxpose.xlu0.b32.cont [12/16] 0.0, 128
    %677 = vxpose.xlu0.b32.cont [13/16] 0.0, 128
    %678 = vxpose.xlu0.b32.cont [14/16] 0.0, 128
    %679 = vxpose.xlu0.b32.cont [15/16] 0.0, 128
    %680 = vxpose.xlu0.b32.end [16/16] 0.0, 128
    %v681 = vpop.trf.xlu0
    %v682 = vpop.trf.xlu0
    %v683 = vpop.trf.xlu0
    %v684 = vpop.trf.xlu0
    %v685 = vpop.trf.xlu0
    %v686 = vpop.trf.xlu0
    %v687 = vpop.trf.xlu0
    %v688 = vpop.trf.xlu0
    %v689 = vpop.trf.xlu0
    %v690 = vpop.trf.xlu0
    %v691 = vpop.trf.xlu0
    %v692 = vpop.trf.xlu0
    %v693 = vpop.trf.xlu0
    %v694 = vpop.trf.xlu0
    %v695 = vpop.trf.xlu0
    %v696 = vpop.trf.xlu0
    %697 = vxpose.xlu0.b32.start [1/16] %v224, 128
    %698 = vxpose.xlu0.b32.cont [2/16] 0.0, 128
    %699 = vxpose.xlu0.b32.cont [3/16] 0.0, 128
    %700 = vxpose.xlu0.b32.cont [4/16] 0.0, 128
    %701 = vxpose.xlu0.b32.cont [5/16] 0.0, 128
    %702 = vxpose.xlu0.b32.cont [6/16] 0.0, 128
    %703 = vxpose.xlu0.b32.cont [7/16] 0.0, 128
    %704 = vxpose.xlu0.b32.cont [8/16] 0.0, 128
    %705 = vxpose.xlu0.b32.cont [9/16] 0.0, 128
    %706 = vxpose.xlu0.b32.cont [10/16] 0.0, 128
    %707 = vxpose.xlu0.b32.cont [11/16] 0.0, 128
    %708 = vxpose.xlu0.b32.cont [12/16] 0.0, 128
    %709 = vxpose.xlu0.b32.cont [13/16] 0.0, 128
    %710 = vxpose.xlu0.b32.cont [14/16] 0.0, 128
    %711 = vxpose.xlu0.b32.cont [15/16] 0.0, 128
    %712 = vxpose.xlu0.b32.end [16/16] 0.0, 128
    %v713 = vpop.trf.xlu0
    %v714 = vpop.trf.xlu0
    %v715 = vpop.trf.xlu0
    %v716 = vpop.trf.xlu0
    %v717 = vpop.trf.xlu0
    %v718 = vpop.trf.xlu0
    %v719 = vpop.trf.xlu0
    %v720 = vpop.trf.xlu0
    %v721 = vpop.trf.xlu0
    %v722 = vpop.trf.xlu0
    %v723 = vpop.trf.xlu0
    %v724 = vpop.trf.xlu0
    %v725 = vpop.trf.xlu0
    %v726 = vpop.trf.xlu0
    %v727 = vpop.trf.xlu0
    %v728 = vpop.trf.xlu0
    %729 = vxpose.xlu0.b32.start [1/16] %v242, 128
    %730 = vxpose.xlu0.b32.cont [2/16] 0.0, 128
    %731 = vxpose.xlu0.b32.cont [3/16] 0.0, 128
    %732 = vxpose.xlu0.b32.cont [4/16] 0.0, 128
    %733 = vxpose.xlu0.b32.cont [5/16] 0.0, 128
    %734 = vxpose.xlu0.b32.cont [6/16] 0.0, 128
    %735 = vxpose.xlu0.b32.cont [7/16] 0.0, 128
    %736 = vxpose.xlu0.b32.cont [8/16] 0.0, 128
    %737 = vxpose.xlu0.b32.cont [9/16] 0.0, 128
    %738 = vxpose.xlu0.b32.cont [10/16] 0.0, 128
    %739 = vxpose.xlu0.b32.cont [11/16] 0.0, 128
    %740 = vxpose.xlu0.b32.cont [12/16] 0.0, 128
    %741 = vxpose.xlu0.b32.cont [13/16] 0.0, 128
    %742 = vxpose.xlu0.b32.cont [14/16] 0.0, 128
    %743 = vxpose.xlu0.b32.cont [15/16] 0.0, 128
    %744 = vxpose.xlu0.b32.end [16/16] 0.0, 128
    %v745 = vpop.trf.xlu0
    %v746 = vpop.trf.xlu0
    %v747 = vpop.trf.xlu0
    %v748 = vpop.trf.xlu0
    %v749 = vpop.trf.xlu0
    %v750 = vpop.trf.xlu0
    %v751 = vpop.trf.xlu0
    %v752 = vpop.trf.xlu0
    %v753 = vpop.trf.xlu0
    %v754 = vpop.trf.xlu0
    %v755 = vpop.trf.xlu0
    %v756 = vpop.trf.xlu0
    %v757 = vpop.trf.xlu0
    %v758 = vpop.trf.xlu0
    %v759 = vpop.trf.xlu0
    %v760 = vpop.trf.xlu0
    %761 = vxpose.xlu0.b32.start [1/16] %v233, 128
    %762 = vxpose.xlu0.b32.cont [2/16] 0.0, 128
    %763 = vxpose.xlu0.b32.cont [3/16] 0.0, 128
    %764 = vxpose.xlu0.b32.cont [4/16] 0.0, 128
    %765 = vxpose.xlu0.b32.cont [5/16] 0.0, 128
    %766 = vxpose.xlu0.b32.cont [6/16] 0.0, 128
    %767 = vxpose.xlu0.b32.cont [7/16] 0.0, 128
    %768 = vxpose.xlu0.b32.cont [8/16] 0.0, 128
    %769 = vxpose.xlu0.b32.cont [9/16] 0.0, 128
    %770 = vxpose.xlu0.b32.cont [10/16] 0.0, 128
    %771 = vxpose.xlu0.b32.cont [11/16] 0.0, 128
    %772 = vxpose.xlu0.b32.cont [12/16] 0.0, 128
    %773 = vxpose.xlu0.b32.cont [13/16] 0.0, 128
    %774 = vxpose.xlu0.b32.cont [14/16] 0.0, 128
    %775 = vxpose.xlu0.b32.cont [15/16] 0.0, 128
    %776 = vxpose.xlu0.b32.end [16/16] 0.0, 128
    %v777 = vpop.trf.xlu0
    %v778 = vpop.trf.xlu0
    %v779 = vpop.trf.xlu0
    %v780 = vpop.trf.xlu0
    %v781 = vpop.trf.xlu0
    %v782 = vpop.trf.xlu0
    %v783 = vpop.trf.xlu0
    %v784 = vpop.trf.xlu0
    %v785 = vpop.trf.xlu0
    %v786 = vpop.trf.xlu0
    %v787 = vpop.trf.xlu0
    %v788 = vpop.trf.xlu0
    %v789 = vpop.trf.xlu0
    %v790 = vpop.trf.xlu0
    %v791 = vpop.trf.xlu0
    %v792 = vpop.trf.xlu0
    %793 = vxpose.xlu0.b32.start [1/16] %v243, 128
    %794 = vxpose.xlu0.b32.cont [2/16] 0.0, 128
    %795 = vxpose.xlu0.b32.cont [3/16] 0.0, 128
    %796 = vxpose.xlu0.b32.cont [4/16] 0.0, 128
    %797 = vxpose.xlu0.b32.cont [5/16] 0.0, 128
    %798 = vxpose.xlu0.b32.cont [6/16] 0.0, 128
    %799 = vxpose.xlu0.b32.cont [7/16] 0.0, 128
    %800 = vxpose.xlu0.b32.cont [8/16] 0.0, 128
    %801 = vxpose.xlu0.b32.cont [9/16] 0.0, 128
    %802 = vxpose.xlu0.b32.cont [10/16] 0.0, 128
    %803 = vxpose.xlu0.b32.cont [11/16] 0.0, 128
    %804 = vxpose.xlu0.b32.cont [12/16] 0.0, 128
    %805 = vxpose.xlu0.b32.cont [13/16] 0.0, 128
    %806 = vxpose.xlu0.b32.cont [14/16] 0.0, 128
    %807 = vxpose.xlu0.b32.cont [15/16] 0.0, 128
    %808 = vxpose.xlu0.b32.end [16/16] 0.0, 128
    %v809 = vpop.trf.xlu0
    %v810 = vpop.trf.xlu0
    %v811 = vpop.trf.xlu0
    %v812 = vpop.trf.xlu0
    %v813 = vpop.trf.xlu0
    %v814 = vpop.trf.xlu0
    %v815 = vpop.trf.xlu0
    %v816 = vpop.trf.xlu0
    %v817 = vpop.trf.xlu0
    %v818 = vpop.trf.xlu0
    %v819 = vpop.trf.xlu0
    %v820 = vpop.trf.xlu0
    %v821 = vpop.trf.xlu0
    %v822 = vpop.trf.xlu0
    %v823 = vpop.trf.xlu0
    %v824 = vpop.trf.xlu0
    %825 = vxpose.xlu0.b32.start [1/16] %v240, 128
    %826 = vxpose.xlu0.b32.cont [2/16] 0.0, 128
    %827 = vxpose.xlu0.b32.cont [3/16] 0.0, 128
    %828 = vxpose.xlu0.b32.cont [4/16] 0.0, 128
    %829 = vxpose.xlu0.b32.cont [5/16] 0.0, 128
    %830 = vxpose.xlu0.b32.cont [6/16] 0.0, 128
    %831 = vxpose.xlu0.b32.cont [7/16] 0.0, 128
    %832 = vxpose.xlu0.b32.cont [8/16] 0.0, 128
    %833 = vxpose.xlu0.b32.cont [9/16] 0.0, 128
    %834 = vxpose.xlu0.b32.cont [10/16] 0.0, 128
    %835 = vxpose.xlu0.b32.cont [11/16] 0.0, 128
    %836 = vxpose.xlu0.b32.cont [12/16] 0.0, 128
    %837 = vxpose.xlu0.b32.cont [13/16] 0.0, 128
    %838 = vxpose.xlu0.b32.cont [14/16] 0.0, 128
    %839 = vxpose.xlu0.b32.cont [15/16] 0.0, 128
    %840 = vxpose.xlu0.b32.end [16/16] 0.0, 128
    %v841 = vpop.trf.xlu0
    %v842 = vpop.trf.xlu0
    %v843 = vpop.trf.xlu0
    %v844 = vpop.trf.xlu0
    %v845 = vpop.trf.xlu0
    %v846 = vpop.trf.xlu0
    %v847 = vpop.trf.xlu0
    %v848 = vpop.trf.xlu0
    %v849 = vpop.trf.xlu0
    %v850 = vpop.trf.xlu0
    %v851 = vpop.trf.xlu0
    %v852 = vpop.trf.xlu0
    %v853 = vpop.trf.xlu0
    %v854 = vpop.trf.xlu0
    %v855 = vpop.trf.xlu0
    %v856 = vpop.trf.xlu0
    %857 = vxpose.xlu0.b32.start [1/16] %v244, 128
    %858 = vxpose.xlu0.b32.cont [2/16] 0.0, 128
    %859 = vxpose.xlu0.b32.cont [3/16] 0.0, 128
    %860 = vxpose.xlu0.b32.cont [4/16] 0.0, 128
    %861 = vxpose.xlu0.b32.cont [5/16] 0.0, 128
    %862 = vxpose.xlu0.b32.cont [6/16] 0.0, 128
    %863 = vxpose.xlu0.b32.cont [7/16] 0.0, 128
    %864 = vxpose.xlu0.b32.cont [8/16] 0.0, 128
    %865 = vxpose.xlu0.b32.cont [9/16] 0.0, 128
    %866 = vxpose.xlu0.b32.cont [10/16] 0.0, 128
    %867 = vxpose.xlu0.b32.cont [11/16] 0.0, 128
    %868 = vxpose.xlu0.b32.cont [12/16] 0.0, 128
    %869 = vxpose.xlu0.b32.cont [13/16] 0.0, 128
    %870 = vxpose.xlu0.b32.cont [14/16] 0.0, 128
    %871 = vxpose.xlu0.b32.cont [15/16] 0.0, 128
    %872 = vxpose.xlu0.b32.end [16/16] 0.0, 128
    %v873 = vpop.trf.xlu0
    %v874 = vpop.trf.xlu0
    %v875 = vpop.trf.xlu0
    %v876 = vpop.trf.xlu0
    %v877 = vpop.trf.xlu0
    %v878 = vpop.trf.xlu0
    %v879 = vpop.trf.xlu0
    %v880 = vpop.trf.xlu0
    %v881 = vpop.trf.xlu0
    %v882 = vpop.trf.xlu0
    %v883 = vpop.trf.xlu0
    %v884 = vpop.trf.xlu0
    %v885 = vpop.trf.xlu0
    %v886 = vpop.trf.xlu0
    %v887 = vpop.trf.xlu0
    %v888 = vpop.trf.xlu0
    %889 = vxpose.xlu0.b32.start [1/16] %v283, 128
    %890 = vxpose.xlu0.b32.cont [2/16] 0.0, 128
    %891 = vxpose.xlu0.b32.cont [3/16] 0.0, 128
    %892 = vxpose.xlu0.b32.cont [4/16] 0.0, 128
    %893 = vxpose.xlu0.b32.cont [5/16] 0.0, 128
    %894 = vxpose.xlu0.b32.cont [6/16] 0.0, 128
    %895 = vxpose.xlu0.b32.cont [7/16] 0.0, 128
    %896 = vxpose.xlu0.b32.cont [8/16] 0.0, 128
    %897 = vxpose.xlu0.b32.cont [9/16] 0.0, 128
    %898 = vxpose.xlu0.b32.cont [10/16] 0.0, 128
    %899 = vxpose.xlu0.b32.cont [11/16] 0.0, 128
    %900 = vxpose.xlu0.b32.cont [12/16] 0.0, 128
    %901 = vxpose.xlu0.b32.cont [13/16] 0.0, 128
    %902 = vxpose.xlu0.b32.cont [14/16] 0.0, 128
    %903 = vxpose.xlu0.b32.cont [15/16] 0.0, 128
    %904 = vxpose.xlu0.b32.end [16/16] 0.0, 128
    %v905 = vpop.trf.xlu0
    %v906 = vpop.trf.xlu0
    %v907 = vpop.trf.xlu0
    %v908 = vpop.trf.xlu0
    %v909 = vpop.trf.xlu0
    %v910 = vpop.trf.xlu0
    %v911 = vpop.trf.xlu0
    %v912 = vpop.trf.xlu0
    %v913 = vpop.trf.xlu0
    %v914 = vpop.trf.xlu0
    %v915 = vpop.trf.xlu0
    %v916 = vpop.trf.xlu0
    %v917 = vpop.trf.xlu0
    %v918 = vpop.trf.xlu0
    %v919 = vpop.trf.xlu0
    %v920 = vpop.trf.xlu0
    %921 = vxpose.xlu0.b32.start [1/16] %v307, 128
    %922 = vxpose.xlu0.b32.cont [2/16] 0.0, 128
    %923 = vxpose.xlu0.b32.cont [3/16] 0.0, 128
    %924 = vxpose.xlu0.b32.cont [4/16] 0.0, 128
    %925 = vxpose.xlu0.b32.cont [5/16] 0.0, 128
    %926 = vxpose.xlu0.b32.cont [6/16] 0.0, 128
    %927 = vxpose.xlu0.b32.cont [7/16] 0.0, 128
    %928 = vxpose.xlu0.b32.cont [8/16] 0.0, 128
    %929 = vxpose.xlu0.b32.cont [9/16] 0.0, 128
    %930 = vxpose.xlu0.b32.cont [10/16] 0.0, 128
    %931 = vxpose.xlu0.b32.cont [11/16] 0.0, 128
    %932 = vxpose.xlu0.b32.cont [12/16] 0.0, 128
    %933 = vxpose.xlu0.b32.cont [13/16] 0.0, 128
    %934 = vxpose.xlu0.b32.cont [14/16] 0.0, 128
    %935 = vxpose.xlu0.b32.cont [15/16] 0.0, 128
    %936 = vxpose.xlu0.b32.end [16/16] 0.0, 128
    %v937 = vpop.trf.xlu0
    %v938 = vpop.trf.xlu0
    %v939 = vpop.trf.xlu0
    %v940 = vpop.trf.xlu0
    %v941 = vpop.trf.xlu0
    %v942 = vpop.trf.xlu0
    %v943 = vpop.trf.xlu0
    %v944 = vpop.trf.xlu0
    %v945 = vpop.trf.xlu0
    %v946 = vpop.trf.xlu0
    %v947 = vpop.trf.xlu0
    %v948 = vpop.trf.xlu0
    %v949 = vpop.trf.xlu0
    %v950 = vpop.trf.xlu0
    %v951 = vpop.trf.xlu0
    %v952 = vpop.trf.xlu0
    %953 = vxpose.xlu0.b32.start [1/16] %v290, 128
    %954 = vxpose.xlu0.b32.cont [2/16] 0.0, 128
    %955 = vxpose.xlu0.b32.cont [3/16] 0.0, 128
    %956 = vxpose.xlu0.b32.cont [4/16] 0.0, 128
    %957 = vxpose.xlu0.b32.cont [5/16] 0.0, 128
    %958 = vxpose.xlu0.b32.cont [6/16] 0.0, 128
    %959 = vxpose.xlu0.b32.cont [7/16] 0.0, 128
    %960 = vxpose.xlu0.b32.cont [8/16] 0.0, 128
    %961 = vxpose.xlu0.b32.cont [9/16] 0.0, 128
    %962 = vxpose.xlu0.b32.cont [10/16] 0.0, 128
    %963 = vxpose.xlu0.b32.cont [11/16] 0.0, 128
    %964 = vxpose.xlu0.b32.cont [12/16] 0.0, 128
    %965 = vxpose.xlu0.b32.cont [13/16] 0.0, 128
    %966 = vxpose.xlu0.b32.cont [14/16] 0.0, 128
    %967 = vxpose.xlu0.b32.cont [15/16] 0.0, 128
    %968 = vxpose.xlu0.b32.end [16/16] 0.0, 128
    %v969 = vpop.trf.xlu0
    %v970 = vpop.trf.xlu0
    %v971 = vpop.trf.xlu0
    %v972 = vpop.trf.xlu0
    %v973 = vpop.trf.xlu0
    %v974 = vpop.trf.xlu0
    %v975 = vpop.trf.xlu0
    %v976 = vpop.trf.xlu0
    %v977 = vpop.trf.xlu0
    %v978 = vpop.trf.xlu0
    %v979 = vpop.trf.xlu0
    %v980 = vpop.trf.xlu0
    %v981 = vpop.trf.xlu0
    %v982 = vpop.trf.xlu0
    %v983 = vpop.trf.xlu0
    %v984 = vpop.trf.xlu0
    %985 = vxpose.xlu0.b32.start [1/16] %v308, 128
    %986 = vxpose.xlu0.b32.cont [2/16] 0.0, 128
    %987 = vxpose.xlu0.b32.cont [3/16] 0.0, 128
    %988 = vxpose.xlu0.b32.cont [4/16] 0.0, 128
    %989 = vxpose.xlu0.b32.cont [5/16] 0.0, 128
    %990 = vxpose.xlu0.b32.cont [6/16] 0.0, 128
    %991 = vxpose.xlu0.b32.cont [7/16] 0.0, 128
    %992 = vxpose.xlu0.b32.cont [8/16] 0.0, 128
    %993 = vxpose.xlu0.b32.cont [9/16] 0.0, 128
    %994 = vxpose.xlu0.b32.cont [10/16] 0.0, 128
    %995 = vxpose.xlu0.b32.cont [11/16] 0.0, 128
    %996 = vxpose.xlu0.b32.cont [12/16] 0.0, 128
    %997 = vxpose.xlu0.b32.cont [13/16] 0.0, 128
    %998 = vxpose.xlu0.b32.cont [14/16] 0.0, 128
    %999 = vxpose.xlu0.b32.cont [15/16] 0.0, 128
    %1000 = vxpose.xlu0.b32.end [16/16] 0.0, 128
    %v1001 = vpop.trf.xlu0
    %v1002 = vpop.trf.xlu0
    %v1003 = vpop.trf.xlu0
    %v1004 = vpop.trf.xlu0
    %v1005 = vpop.trf.xlu0
    %v1006 = vpop.trf.xlu0
    %v1007 = vpop.trf.xlu0
    %v1008 = vpop.trf.xlu0
    %v1009 = vpop.trf.xlu0
    %v1010 = vpop.trf.xlu0
    %v1011 = vpop.trf.xlu0
    %v1012 = vpop.trf.xlu0
    %v1013 = vpop.trf.xlu0
    %v1014 = vpop.trf.xlu0
    %v1015 = vpop.trf.xlu0
    %v1016 = vpop.trf.xlu0
    %1017 = vxpose.xlu0.b32.start [1/16] %v299, 128
    %1018 = vxpose.xlu0.b32.cont [2/16] 0.0, 128
    %1019 = vxpose.xlu0.b32.cont [3/16] 0.0, 128
    %1020 = vxpose.xlu0.b32.cont [4/16] 0.0, 128
    %1021 = vxpose.xlu0.b32.cont [5/16] 0.0, 128
    %1022 = vxpose.xlu0.b32.cont [6/16] 0.0, 128
    %1023 = vxpose.xlu0.b32.cont [7/16] 0.0, 128
    %1024 = vxpose.xlu0.b32.cont [8/16] 0.0, 128
    %1025 = vxpose.xlu0.b32.cont [9/16] 0.0, 128
    %1026 = vxpose.xlu0.b32.cont [10/16] 0.0, 128
    %1027 = vxpose.xlu0.b32.cont [11/16] 0.0, 128
    %1028 = vxpose.xlu0.b32.cont [12/16] 0.0, 128
    %1029 = vxpose.xlu0.b32.cont [13/16] 0.0, 128
    %1030 = vxpose.xlu0.b32.cont [14/16] 0.0, 128
    %1031 = vxpose.xlu0.b32.cont [15/16] 0.0, 128
    %1032 = vxpose.xlu0.b32.end [16/16] 0.0, 128
    %v1033 = vpop.trf.xlu0
    %v1034 = vpop.trf.xlu0
    %v1035 = vpop.trf.xlu0
    %v1036 = vpop.trf.xlu0
    %v1037 = vpop.trf.xlu0
    %v1038 = vpop.trf.xlu0
    %v1039 = vpop.trf.xlu0
    %v1040 = vpop.trf.xlu0
    %v1041 = vpop.trf.xlu0
    %v1042 = vpop.trf.xlu0
    %v1043 = vpop.trf.xlu0
    %v1044 = vpop.trf.xlu0
    %v1045 = vpop.trf.xlu0
    %v1046 = vpop.trf.xlu0
    %v1047 = vpop.trf.xlu0
    %v1048 = vpop.trf.xlu0
    %1049 = vxpose.xlu0.b32.start [1/16] %v309, 128
    %1050 = vxpose.xlu0.b32.cont [2/16] 0.0, 128
    %1051 = vxpose.xlu0.b32.cont [3/16] 0.0, 128
    %1052 = vxpose.xlu0.b32.cont [4/16] 0.0, 128
    %1053 = vxpose.xlu0.b32.cont [5/16] 0.0, 128
    %1054 = vxpose.xlu0.b32.cont [6/16] 0.0, 128
    %1055 = vxpose.xlu0.b32.cont [7/16] 0.0, 128
    %1056 = vxpose.xlu0.b32.cont [8/16] 0.0, 128
    %1057 = vxpose.xlu0.b32.cont [9/16] 0.0, 128
    %1058 = vxpose.xlu0.b32.cont [10/16] 0.0, 128
    %1059 = vxpose.xlu0.b32.cont [11/16] 0.0, 128
    %1060 = vxpose.xlu0.b32.cont [12/16] 0.0, 128
    %1061 = vxpose.xlu0.b32.cont [13/16] 0.0, 128
    %1062 = vxpose.xlu0.b32.cont [14/16] 0.0, 128
    %1063 = vxpose.xlu0.b32.cont [15/16] 0.0, 128
    %1064 = vxpose.xlu0.b32.end [16/16] 0.0, 128
    %v1065 = vpop.trf.xlu0
    %v1066 = vpop.trf.xlu0
    %v1067 = vpop.trf.xlu0
    %v1068 = vpop.trf.xlu0
    %v1069 = vpop.trf.xlu0
    %v1070 = vpop.trf.xlu0
    %v1071 = vpop.trf.xlu0
    %v1072 = vpop.trf.xlu0
    %v1073 = vpop.trf.xlu0
    %v1074 = vpop.trf.xlu0
    %v1075 = vpop.trf.xlu0
    %v1076 = vpop.trf.xlu0
    %v1077 = vpop.trf.xlu0
    %v1078 = vpop.trf.xlu0
    %v1079 = vpop.trf.xlu0
    %v1080 = vpop.trf.xlu0
    %1081 = vxpose.xlu0.b32.start [1/16] %v306, 128
    %1082 = vxpose.xlu0.b32.cont [2/16] 0.0, 128
    %1083 = vxpose.xlu0.b32.cont [3/16] 0.0, 128
    %1084 = vxpose.xlu0.b32.cont [4/16] 0.0, 128
    %1085 = vxpose.xlu0.b32.cont [5/16] 0.0, 128
    %1086 = vxpose.xlu0.b32.cont [6/16] 0.0, 128
    %1087 = vxpose.xlu0.b32.cont [7/16] 0.0, 128
    %1088 = vxpose.xlu0.b32.cont [8/16] 0.0, 128
    %1089 = vxpose.xlu0.b32.cont [9/16] 0.0, 128
    %1090 = vxpose.xlu0.b32.cont [10/16] 0.0, 128
    %1091 = vxpose.xlu0.b32.cont [11/16] 0.0, 128
    %1092 = vxpose.xlu0.b32.cont [12/16] 0.0, 128
    %1093 = vxpose.xlu0.b32.cont [13/16] 0.0, 128
    %1094 = vxpose.xlu0.b32.cont [14/16] 0.0, 128
    %1095 = vxpose.xlu0.b32.cont [15/16] 0.0, 128
    %1096 = vxpose.xlu0.b32.end [16/16] 0.0, 128
    %v1097 = vpop.trf.xlu0
    %v1098 = vpop.trf.xlu0
    %v1099 = vpop.trf.xlu0
    %v1100 = vpop.trf.xlu0
    %v1101 = vpop.trf.xlu0
    %v1102 = vpop.trf.xlu0
    %v1103 = vpop.trf.xlu0
    %v1104 = vpop.trf.xlu0
    %v1105 = vpop.trf.xlu0
    %v1106 = vpop.trf.xlu0
    %v1107 = vpop.trf.xlu0
    %v1108 = vpop.trf.xlu0
    %v1109 = vpop.trf.xlu0
    %v1110 = vpop.trf.xlu0
    %v1111 = vpop.trf.xlu0
    %v1112 = vpop.trf.xlu0
    %1113 = vxpose.xlu0.b32.start [1/16] %v310, 128
    %1114 = vxpose.xlu0.b32.cont [2/16] 0.0, 128
    %1115 = vxpose.xlu0.b32.cont [3/16] 0.0, 128
    %1116 = vxpose.xlu0.b32.cont [4/16] 0.0, 128
    %1117 = vxpose.xlu0.b32.cont [5/16] 0.0, 128
    %1118 = vxpose.xlu0.b32.cont [6/16] 0.0, 128
    %1119 = vxpose.xlu0.b32.cont [7/16] 0.0, 128
    %1120 = vxpose.xlu0.b32.cont [8/16] 0.0, 128
    %1121 = vxpose.xlu0.b32.cont [9/16] 0.0, 128
    %1122 = vxpose.xlu0.b32.cont [10/16] 0.0, 128
    %1123 = vxpose.xlu0.b32.cont [11/16] 0.0, 128
    %1124 = vxpose.xlu0.b32.cont [12/16] 0.0, 128
    %1125 = vxpose.xlu0.b32.cont [13/16] 0.0, 128
    %1126 = vxpose.xlu0.b32.cont [14/16] 0.0, 128
    %1127 = vxpose.xlu0.b32.cont [15/16] 0.0, 128
    %1128 = vxpose.xlu0.b32.end [16/16] 0.0, 128
    %v1129 = vpop.trf.xlu0
    %v1130 = vpop.trf.xlu0
    %v1131 = vpop.trf.xlu0
    %v1132 = vpop.trf.xlu0
    %v1133 = vpop.trf.xlu0
    %v1134 = vpop.trf.xlu0
    %v1135 = vpop.trf.xlu0
    %v1136 = vpop.trf.xlu0
    %v1137 = vpop.trf.xlu0
    %v1138 = vpop.trf.xlu0
    %v1139 = vpop.trf.xlu0
    %v1140 = vpop.trf.xlu0
    %v1141 = vpop.trf.xlu0
    %v1142 = vpop.trf.xlu0
    %v1143 = vpop.trf.xlu0
    %v1144 = vpop.trf.xlu0
    %1145 = vxpose.xlu0.b32.start [1/16] %v349, 128
    %1146 = vxpose.xlu0.b32.cont [2/16] 0.0, 128
    %1147 = vxpose.xlu0.b32.cont [3/16] 0.0, 128
    %1148 = vxpose.xlu0.b32.cont [4/16] 0.0, 128
    %1149 = vxpose.xlu0.b32.cont [5/16] 0.0, 128
    %1150 = vxpose.xlu0.b32.cont [6/16] 0.0, 128
    %1151 = vxpose.xlu0.b32.cont [7/16] 0.0, 128
    %1152 = vxpose.xlu0.b32.cont [8/16] 0.0, 128
    %1153 = vxpose.xlu0.b32.cont [9/16] 0.0, 128
    %1154 = vxpose.xlu0.b32.cont [10/16] 0.0, 128
    %1155 = vxpose.xlu0.b32.cont [11/16] 0.0, 128
    %1156 = vxpose.xlu0.b32.cont [12/16] 0.0, 128
    %1157 = vxpose.xlu0.b32.cont [13/16] 0.0, 128
    %1158 = vxpose.xlu0.b32.cont [14/16] 0.0, 128
    %1159 = vxpose.xlu0.b32.cont [15/16] 0.0, 128
    %1160 = vxpose.xlu0.b32.end [16/16] 0.0, 128
    %v1161 = vpop.trf.xlu0
    %v1162 = vpop.trf.xlu0
    %v1163 = vpop.trf.xlu0
    %v1164 = vpop.trf.xlu0
    %v1165 = vpop.trf.xlu0
    %v1166 = vpop.trf.xlu0
    %v1167 = vpop.trf.xlu0
    %v1168 = vpop.trf.xlu0
    %v1169 = vpop.trf.xlu0
    %v1170 = vpop.trf.xlu0
    %v1171 = vpop.trf.xlu0
    %v1172 = vpop.trf.xlu0
    %v1173 = vpop.trf.xlu0
    %v1174 = vpop.trf.xlu0
    %v1175 = vpop.trf.xlu0
    %v1176 = vpop.trf.xlu0
    %1177 = vxpose.xlu0.b32.start [1/16] %v373, 128
    %1178 = vxpose.xlu0.b32.cont [2/16] 0.0, 128
    %1179 = vxpose.xlu0.b32.cont [3/16] 0.0, 128
    %1180 = vxpose.xlu0.b32.cont [4/16] 0.0, 128
    %1181 = vxpose.xlu0.b32.cont [5/16] 0.0, 128
    %1182 = vxpose.xlu0.b32.cont [6/16] 0.0, 128
    %1183 = vxpose.xlu0.b32.cont [7/16] 0.0, 128
    %1184 = vxpose.xlu0.b32.cont [8/16] 0.0, 128
    %1185 = vxpose.xlu0.b32.cont [9/16] 0.0, 128
    %1186 = vxpose.xlu0.b32.cont [10/16] 0.0, 128
    %1187 = vxpose.xlu0.b32.cont [11/16] 0.0, 128
    %1188 = vxpose.xlu0.b32.cont [12/16] 0.0, 128
    %1189 = vxpose.xlu0.b32.cont [13/16] 0.0, 128
    %1190 = vxpose.xlu0.b32.cont [14/16] 0.0, 128
    %1191 = vxpose.xlu0.b32.cont [15/16] 0.0, 128
    %1192 = vxpose.xlu0.b32.end [16/16] 0.0, 128
    %v1193 = vpop.trf.xlu0
    %v1194 = vpop.trf.xlu0
    %v1195 = vpop.trf.xlu0
    %v1196 = vpop.trf.xlu0
    %v1197 = vpop.trf.xlu0
    %v1198 = vpop.trf.xlu0
    %v1199 = vpop.trf.xlu0
    %v1200 = vpop.trf.xlu0
    %v1201 = vpop.trf.xlu0
    %v1202 = vpop.trf.xlu0
    %v1203 = vpop.trf.xlu0
    %v1204 = vpop.trf.xlu0
    %v1205 = vpop.trf.xlu0
    %v1206 = vpop.trf.xlu0
    %v1207 = vpop.trf.xlu0
    %v1208 = vpop.trf.xlu0
    %1209 = vxpose.xlu0.b32.start [1/16] %v356, 128
    %1210 = vxpose.xlu0.b32.cont [2/16] 0.0, 128
    %1211 = vxpose.xlu0.b32.cont [3/16] 0.0, 128
    %1212 = vxpose.xlu0.b32.cont [4/16] 0.0, 128
    %1213 = vxpose.xlu0.b32.cont [5/16] 0.0, 128
    %1214 = vxpose.xlu0.b32.cont [6/16] 0.0, 128
    %1215 = vxpose.xlu0.b32.cont [7/16] 0.0, 128
    %1216 = vxpose.xlu0.b32.cont [8/16] 0.0, 128
    %1217 = vxpose.xlu0.b32.cont [9/16] 0.0, 128
    %1218 = vxpose.xlu0.b32.cont [10/16] 0.0, 128
    %1219 = vxpose.xlu0.b32.cont [11/16] 0.0, 128
    %1220 = vxpose.xlu0.b32.cont [12/16] 0.0, 128
    %1221 = vxpose.xlu0.b32.cont [13/16] 0.0, 128
    %1222 = vxpose.xlu0.b32.cont [14/16] 0.0, 128
    %1223 = vxpose.xlu0.b32.cont [15/16] 0.0, 128
    %1224 = vxpose.xlu0.b32.end [16/16] 0.0, 128
    %v1225 = vpop.trf.xlu0
    %v1226 = vpop.trf.xlu0
    %v1227 = vpop.trf.xlu0
    %v1228 = vpop.trf.xlu0
    %v1229 = vpop.trf.xlu0
    %v1230 = vpop.trf.xlu0
    %v1231 = vpop.trf.xlu0
    %v1232 = vpop.trf.xlu0
    %v1233 = vpop.trf.xlu0
    %v1234 = vpop.trf.xlu0
    %v1235 = vpop.trf.xlu0
    %v1236 = vpop.trf.xlu0
    %v1237 = vpop.trf.xlu0
    %v1238 = vpop.trf.xlu0
    %v1239 = vpop.trf.xlu0
    %v1240 = vpop.trf.xlu0
    %1241 = vxpose.xlu0.b32.start [1/16] %v374, 128
    %1242 = vxpose.xlu0.b32.cont [2/16] 0.0, 128
    %1243 = vxpose.xlu0.b32.cont [3/16] 0.0, 128
    %1244 = vxpose.xlu0.b32.cont [4/16] 0.0, 128
    %1245 = vxpose.xlu0.b32.cont [5/16] 0.0, 128
    %1246 = vxpose.xlu0.b32.cont [6/16] 0.0, 128
    %1247 = vxpose.xlu0.b32.cont [7/16] 0.0, 128
    %1248 = vxpose.xlu0.b32.cont [8/16] 0.0, 128
    %1249 = vxpose.xlu0.b32.cont [9/16] 0.0, 128
    %1250 = vxpose.xlu0.b32.cont [10/16] 0.0, 128
    %1251 = vxpose.xlu0.b32.cont [11/16] 0.0, 128
    %1252 = vxpose.xlu0.b32.cont [12/16] 0.0, 128
    %1253 = vxpose.xlu0.b32.cont [13/16] 0.0, 128
    %1254 = vxpose.xlu0.b32.cont [14/16] 0.0, 128
    %1255 = vxpose.xlu0.b32.cont [15/16] 0.0, 128
    %1256 = vxpose.xlu0.b32.end [16/16] 0.0, 128
    %v1257 = vpop.trf.xlu0
    %v1258 = vpop.trf.xlu0
    %v1259 = vpop.trf.xlu0
    %v1260 = vpop.trf.xlu0
    %v1261 = vpop.trf.xlu0
    %v1262 = vpop.trf.xlu0
    %v1263 = vpop.trf.xlu0
    %v1264 = vpop.trf.xlu0
    %v1265 = vpop.trf.xlu0
    %v1266 = vpop.trf.xlu0
    %v1267 = vpop.trf.xlu0
    %v1268 = vpop.trf.xlu0
    %v1269 = vpop.trf.xlu0
    %v1270 = vpop.trf.xlu0
    %v1271 = vpop.trf.xlu0
    %v1272 = vpop.trf.xlu0
    %1273 = vxpose.xlu0.b32.start [1/16] %v365, 128
    %1274 = vxpose.xlu0.b32.cont [2/16] 0.0, 128
    %1275 = vxpose.xlu0.b32.cont [3/16] 0.0, 128
    %1276 = vxpose.xlu0.b32.cont [4/16] 0.0, 128
    %1277 = vxpose.xlu0.b32.cont [5/16] 0.0, 128
    %1278 = vxpose.xlu0.b32.cont [6/16] 0.0, 128
    %1279 = vxpose.xlu0.b32.cont [7/16] 0.0, 128
    %1280 = vxpose.xlu0.b32.cont [8/16] 0.0, 128
    %1281 = vxpose.xlu0.b32.cont [9/16] 0.0, 128
    %1282 = vxpose.xlu0.b32.cont [10/16] 0.0, 128
    %1283 = vxpose.xlu0.b32.cont [11/16] 0.0, 128
    %1284 = vxpose.xlu0.b32.cont [12/16] 0.0, 128
    %1285 = vxpose.xlu0.b32.cont [13/16] 0.0, 128
    %1286 = vxpose.xlu0.b32.cont [14/16] 0.0, 128
    %1287 = vxpose.xlu0.b32.cont [15/16] 0.0, 128
    %1288 = vxpose.xlu0.b32.end [16/16] 0.0, 128
    %v1289 = vpop.trf.xlu0
    %v1290 = vpop.trf.xlu0
    %v1291 = vpop.trf.xlu0
    %v1292 = vpop.trf.xlu0
    %v1293 = vpop.trf.xlu0
    %v1294 = vpop.trf.xlu0
    %v1295 = vpop.trf.xlu0
    %v1296 = vpop.trf.xlu0
    %v1297 = vpop.trf.xlu0
    %v1298 = vpop.trf.xlu0
    %v1299 = vpop.trf.xlu0
    %v1300 = vpop.trf.xlu0
    %v1301 = vpop.trf.xlu0
    %v1302 = vpop.trf.xlu0
    %v1303 = vpop.trf.xlu0
    %v1304 = vpop.trf.xlu0
    %1305 = vxpose.xlu0.b32.start [1/16] %v375, 128
    %1306 = vxpose.xlu0.b32.cont [2/16] 0.0, 128
    %1307 = vxpose.xlu0.b32.cont [3/16] 0.0, 128
    %1308 = vxpose.xlu0.b32.cont [4/16] 0.0, 128
    %1309 = vxpose.xlu0.b32.cont [5/16] 0.0, 128
    %1310 = vxpose.xlu0.b32.cont [6/16] 0.0, 128
    %1311 = vxpose.xlu0.b32.cont [7/16] 0.0, 128
    %1312 = vxpose.xlu0.b32.cont [8/16] 0.0, 128
    %1313 = vxpose.xlu0.b32.cont [9/16] 0.0, 128
    %1314 = vxpose.xlu0.b32.cont [10/16] 0.0, 128
    %1315 = vxpose.xlu0.b32.cont [11/16] 0.0, 128
    %1316 = vxpose.xlu0.b32.cont [12/16] 0.0, 128
    %1317 = vxpose.xlu0.b32.cont [13/16] 0.0, 128
    %1318 = vxpose.xlu0.b32.cont [14/16] 0.0, 128
    %1319 = vxpose.xlu0.b32.cont [15/16] 0.0, 128
    %1320 = vxpose.xlu0.b32.end [16/16] 0.0, 128
    %v1321 = vpop.trf.xlu0
    %v1322 = vpop.trf.xlu0
    %v1323 = vpop.trf.xlu0
    %v1324 = vpop.trf.xlu0
    %v1325 = vpop.trf.xlu0
    %v1326 = vpop.trf.xlu0
    %v1327 = vpop.trf.xlu0
    %v1328 = vpop.trf.xlu0
    %v1329 = vpop.trf.xlu0
    %v1330 = vpop.trf.xlu0
    %v1331 = vpop.trf.xlu0
    %v1332 = vpop.trf.xlu0
    %v1333 = vpop.trf.xlu0
    %v1334 = vpop.trf.xlu0
    %v1335 = vpop.trf.xlu0
    %v1336 = vpop.trf.xlu0
    %1337 = vxpose.xlu0.b32.start [1/16] %v372, 128
    %1338 = vxpose.xlu0.b32.cont [2/16] 0.0, 128
    %1339 = vxpose.xlu0.b32.cont [3/16] 0.0, 128
    %1340 = vxpose.xlu0.b32.cont [4/16] 0.0, 128
    %1341 = vxpose.xlu0.b32.cont [5/16] 0.0, 128
    %1342 = vxpose.xlu0.b32.cont [6/16] 0.0, 128
    %1343 = vxpose.xlu0.b32.cont [7/16] 0.0, 128
    %1344 = vxpose.xlu0.b32.cont [8/16] 0.0, 128
    %1345 = vxpose.xlu0.b32.cont [9/16] 0.0, 128
    %1346 = vxpose.xlu0.b32.cont [10/16] 0.0, 128
    %1347 = vxpose.xlu0.b32.cont [11/16] 0.0, 128
    %1348 = vxpose.xlu0.b32.cont [12/16] 0.0, 128
    %1349 = vxpose.xlu0.b32.cont [13/16] 0.0, 128
    %1350 = vxpose.xlu0.b32.cont [14/16] 0.0, 128
    %1351 = vxpose.xlu0.b32.cont [15/16] 0.0, 128
    %1352 = vxpose.xlu0.b32.end [16/16] 0.0, 128
    %v1353 = vpop.trf.xlu0
    %v1354 = vpop.trf.xlu0
    %v1355 = vpop.trf.xlu0
    %v1356 = vpop.trf.xlu0
    %v1357 = vpop.trf.xlu0
    %v1358 = vpop.trf.xlu0
    %v1359 = vpop.trf.xlu0
    %v1360 = vpop.trf.xlu0
    %v1361 = vpop.trf.xlu0
    %v1362 = vpop.trf.xlu0
    %v1363 = vpop.trf.xlu0
    %v1364 = vpop.trf.xlu0
    %v1365 = vpop.trf.xlu0
    %v1366 = vpop.trf.xlu0
    %v1367 = vpop.trf.xlu0
    %v1368 = vpop.trf.xlu0
    %1369 = vxpose.xlu0.b32.start [1/16] %v376, 128
    %1370 = vxpose.xlu0.b32.cont [2/16] 0.0, 128
    %1371 = vxpose.xlu0.b32.cont [3/16] 0.0, 128
    %1372 = vxpose.xlu0.b32.cont [4/16] 0.0, 128
    %1373 = vxpose.xlu0.b32.cont [5/16] 0.0, 128
    %1374 = vxpose.xlu0.b32.cont [6/16] 0.0, 128
    %1375 = vxpose.xlu0.b32.cont [7/16] 0.0, 128
    %1376 = vxpose.xlu0.b32.cont [8/16] 0.0, 128
    %1377 = vxpose.xlu0.b32.cont [9/16] 0.0, 128
    %1378 = vxpose.xlu0.b32.cont [10/16] 0.0, 128
    %1379 = vxpose.xlu0.b32.cont [11/16] 0.0, 128
    %1380 = vxpose.xlu0.b32.cont [12/16] 0.0, 128
    %1381 = vxpose.xlu0.b32.cont [13/16] 0.0, 128
    %1382 = vxpose.xlu0.b32.cont [14/16] 0.0, 128
    %1383 = vxpose.xlu0.b32.cont [15/16] 0.0, 128
    %1384 = vxpose.xlu0.b32.end [16/16] 0.0, 128
    %v1385 = vpop.trf.xlu0
    %v1386 = vpop.trf.xlu0
    %v1387 = vpop.trf.xlu0
    %v1388 = vpop.trf.xlu0
    %v1389 = vpop.trf.xlu0
    %v1390 = vpop.trf.xlu0
    %v1391 = vpop.trf.xlu0
    %v1392 = vpop.trf.xlu0
    %v1393 = vpop.trf.xlu0
    %v1394 = vpop.trf.xlu0
    %v1395 = vpop.trf.xlu0
    %v1396 = vpop.trf.xlu0
    %v1397 = vpop.trf.xlu0
    %v1398 = vpop.trf.xlu0
    %v1399 = vpop.trf.xlu0
    %v1400 = vpop.trf.xlu0
    %v1401 = vcombine.low %v393, %v457
    %v1402 = vcombine.high %v393, %v457
    %v1404 = vunpack.c.l.s4 1983009808
    %v1405 = vunpack.c.0.s8 %v1404
    %v1406 = vlaneseq
    %v1407 = vshrl.u32 %v1406, 7
    %v1408 = vsub.s32 %v1405, %v1407
    %v1409 = vrot.slane %v1401, %v1408
    %v1411 = vunpack.c.l.s4 1983009808
    %v1412 = vunpack.c.0.s8 %v1411
    %v1413 = vlaneseq
    %v1414 = vshrl.u32 %v1413, 7
    %v1415 = vsub.s32 %v1412, %v1414
    %v1416 = vrot.slane %v1402, %v1415
    %v1417 = vcombine.low %v425, %v489
    %v1418 = vcombine.high %v425, %v489
    %v1420 = vunpack.c.l.s4 1983009808
    %v1421 = vunpack.c.0.s8 %v1420
    %v1422 = vlaneseq
    %v1423 = vshrl.u32 %v1422, 7
    %v1424 = vsub.s32 %v1421, %v1423
    %v1425 = vrot.slane %v1417, %v1424
    %v1427 = vunpack.c.l.s4 1983009808
    %v1428 = vunpack.c.0.s8 %v1427
    %v1429 = vlaneseq
    %v1430 = vshrl.u32 %v1429, 7
    %v1431 = vsub.s32 %v1428, %v1430
    %v1432 = vrot.slane %v1418, %v1431
    %v1433 = vcombine.low %v521, %v585
    %v1434 = vcombine.high %v521, %v585
    %v1436 = vunpack.c.l.s4 1983009808
    %v1437 = vunpack.c.0.s8 %v1436
    %v1438 = vlaneseq
    %v1439 = vshrl.u32 %v1438, 7
    %v1440 = vsub.s32 %v1437, %v1439
    %v1441 = vrot.slane %v1433, %v1440
    %v1443 = vunpack.c.l.s4 1983009808
    %v1444 = vunpack.c.0.s8 %v1443
    %v1445 = vlaneseq
    %v1446 = vshrl.u32 %v1445, 7
    %v1447 = vsub.s32 %v1444, %v1446
    %v1448 = vrot.slane %v1434, %v1447
    %v1449 = vcombine.low %v553, %v617
    %v1450 = vcombine.high %v553, %v617
    %v1452 = vunpack.c.l.s4 1983009808
    %v1453 = vunpack.c.0.s8 %v1452
    %v1454 = vlaneseq
    %v1455 = vshrl.u32 %v1454, 7
    %v1456 = vsub.s32 %v1453, %v1455
    %v1457 = vrot.slane %v1449, %v1456
    %v1459 = vunpack.c.l.s4 1983009808
    %v1460 = vunpack.c.0.s8 %v1459
    %v1461 = vlaneseq
    %v1462 = vshrl.u32 %v1461, 7
    %v1463 = vsub.s32 %v1460, %v1462
    %v1464 = vrot.slane %v1450, %v1463
    %v1465 = vcombine.low %v1409, %v1425
    %v1466 = vcombine.high %v1409, %v1425
    %v1468 = vunpack.c.l.s4 1934713408
    %v1469 = vunpack.c.0.s8 %v1468
    %v1470 = vlaneseq
    %v1471 = vshrl.u32 %v1470, 7
    %v1472 = vsub.s32 %v1469, %v1471
    %v1473 = vrot.slane %v1465, %v1472
    %v1475 = vunpack.c.l.s4 1934713408
    %v1476 = vunpack.c.0.s8 %v1475
    %v1477 = vlaneseq
    %v1478 = vshrl.u32 %v1477, 7
    %v1479 = vsub.s32 %v1476, %v1478
    %v1480 = vrot.slane %v1466, %v1479
    %v1481 = vcombine.low %v1416, %v1432
    %v1482 = vcombine.high %v1416, %v1432
    %v1484 = vunpack.c.l.s4 1934713408
    %v1485 = vunpack.c.0.s8 %v1484
    %v1486 = vlaneseq
    %v1487 = vshrl.u32 %v1486, 7
    %v1488 = vsub.s32 %v1485, %v1487
    %v1489 = vrot.slane %v1481, %v1488
    %v1491 = vunpack.c.l.s4 1934713408
    %v1492 = vunpack.c.0.s8 %v1491
    %v1493 = vlaneseq
    %v1494 = vshrl.u32 %v1493, 7
    %v1495 = vsub.s32 %v1492, %v1494
    %v1496 = vrot.slane %v1482, %v1495
    %v1497 = vcombine.low %v1441, %v1457
    %v1498 = vcombine.high %v1441, %v1457
    %v1500 = vunpack.c.l.s4 1934713408
    %v1501 = vunpack.c.0.s8 %v1500
    %v1502 = vlaneseq
    %v1503 = vshrl.u32 %v1502, 7
    %v1504 = vsub.s32 %v1501, %v1503
    %v1505 = vrot.slane %v1497, %v1504
    %v1507 = vunpack.c.l.s4 1934713408
    %v1508 = vunpack.c.0.s8 %v1507
    %v1509 = vlaneseq
    %v1510 = vshrl.u32 %v1509, 7
    %v1511 = vsub.s32 %v1508, %v1510
    %v1512 = vrot.slane %v1498, %v1511
    %v1513 = vcombine.low %v1448, %v1464
    %v1514 = vcombine.high %v1448, %v1464
    %v1516 = vunpack.c.l.s4 1934713408
    %v1517 = vunpack.c.0.s8 %v1516
    %v1518 = vlaneseq
    %v1519 = vshrl.u32 %v1518, 7
    %v1520 = vsub.s32 %v1517, %v1519
    %v1521 = vrot.slane %v1513, %v1520
    %v1523 = vunpack.c.l.s4 1934713408
    %v1524 = vunpack.c.0.s8 %v1523
    %v1525 = vlaneseq
    %v1526 = vshrl.u32 %v1525, 7
    %v1527 = vsub.s32 %v1524, %v1526
    %v1528 = vrot.slane %v1514, %v1527
    %v1529 = vcombine.low %v1473, %v1505
    %v1530 = vcombine.high %v1473, %v1505
    %v1531 = vcombine.low %v1480, %v1512
    %v1532 = vcombine.high %v1480, %v1512
    %v1533 = vcombine.low %v1489, %v1521
    %v1534 = vcombine.high %v1489, %v1521
    %v1535 = vcombine.low %v1496, %v1528
    %v1536 = vcombine.high %v1496, %v1528
    %v1537 = vcombine.low %v649, %v713
    %v1538 = vcombine.high %v649, %v713
    %v1540 = vunpack.c.l.s4 1983009808
    %v1541 = vunpack.c.0.s8 %v1540
    %v1542 = vlaneseq
    %v1543 = vshrl.u32 %v1542, 7
    %v1544 = vsub.s32 %v1541, %v1543
    %v1545 = vrot.slane %v1537, %v1544
    %v1547 = vunpack.c.l.s4 1983009808
    %v1548 = vunpack.c.0.s8 %v1547
    %v1549 = vlaneseq
    %v1550 = vshrl.u32 %v1549, 7
    %v1551 = vsub.s32 %v1548, %v1550
    %v1552 = vrot.slane %v1538, %v1551
    %v1553 = vcombine.low %v681, %v745
    %v1554 = vcombine.high %v681, %v745
    %v1556 = vunpack.c.l.s4 1983009808
    %v1557 = vunpack.c.0.s8 %v1556
    %v1558 = vlaneseq
    %v1559 = vshrl.u32 %v1558, 7
    %v1560 = vsub.s32 %v1557, %v1559
    %v1561 = vrot.slane %v1553, %v1560
    %v1563 = vunpack.c.l.s4 1983009808
    %v1564 = vunpack.c.0.s8 %v1563
    %v1565 = vlaneseq
    %v1566 = vshrl.u32 %v1565, 7
    %v1567 = vsub.s32 %v1564, %v1566
    %v1568 = vrot.slane %v1554, %v1567
    %v1569 = vcombine.low %v777, %v841
    %v1570 = vcombine.high %v777, %v841
    %v1572 = vunpack.c.l.s4 1983009808
    %v1573 = vunpack.c.0.s8 %v1572
    %v1574 = vlaneseq
    %v1575 = vshrl.u32 %v1574, 7
    %v1576 = vsub.s32 %v1573, %v1575
    %v1577 = vrot.slane %v1569, %v1576
    %v1579 = vunpack.c.l.s4 1983009808
    %v1580 = vunpack.c.0.s8 %v1579
    %v1581 = vlaneseq
    %v1582 = vshrl.u32 %v1581, 7
    %v1583 = vsub.s32 %v1580, %v1582
    %v1584 = vrot.slane %v1570, %v1583
    %v1585 = vcombine.low %v809, %v873
    %v1586 = vcombine.high %v809, %v873
    %v1588 = vunpack.c.l.s4 1983009808
    %v1589 = vunpack.c.0.s8 %v1588
    %v1590 = vlaneseq
    %v1591 = vshrl.u32 %v1590, 7
    %v1592 = vsub.s32 %v1589, %v1591
    %v1593 = vrot.slane %v1585, %v1592
    %v1595 = vunpack.c.l.s4 1983009808
    %v1596 = vunpack.c.0.s8 %v1595
    %v1597 = vlaneseq
    %v1598 = vshrl.u32 %v1597, 7
    %v1599 = vsub.s32 %v1596, %v1598
    %v1600 = vrot.slane %v1586, %v1599
    %v1601 = vcombine.low %v1545, %v1561
    %v1602 = vcombine.high %v1545, %v1561
    %v1604 = vunpack.c.l.s4 1934713408
    %v1605 = vunpack.c.0.s8 %v1604
    %v1606 = vlaneseq
    %v1607 = vshrl.u32 %v1606, 7
    %v1608 = vsub.s32 %v1605, %v1607
    %v1609 = vrot.slane %v1601, %v1608
    %v1611 = vunpack.c.l.s4 1934713408
    %v1612 = vunpack.c.0.s8 %v1611
    %v1613 = vlaneseq
    %v1614 = vshrl.u32 %v1613, 7
    %v1615 = vsub.s32 %v1612, %v1614
    %v1616 = vrot.slane %v1602, %v1615
    %v1617 = vcombine.low %v1552, %v1568
    %v1618 = vcombine.high %v1552, %v1568
    %v1620 = vunpack.c.l.s4 1934713408
    %v1621 = vunpack.c.0.s8 %v1620
    %v1622 = vlaneseq
    %v1623 = vshrl.u32 %v1622, 7
    %v1624 = vsub.s32 %v1621, %v1623
    %v1625 = vrot.slane %v1617, %v1624
    %v1627 = vunpack.c.l.s4 1934713408
    %v1628 = vunpack.c.0.s8 %v1627
    %v1629 = vlaneseq
    %v1630 = vshrl.u32 %v1629, 7
    %v1631 = vsub.s32 %v1628, %v1630
    %v1632 = vrot.slane %v1618, %v1631
    %v1633 = vcombine.low %v1577, %v1593
    %v1634 = vcombine.high %v1577, %v1593
    %v1636 = vunpack.c.l.s4 1934713408
    %v1637 = vunpack.c.0.s8 %v1636
    %v1638 = vlaneseq
    %v1639 = vshrl.u32 %v1638, 7
    %v1640 = vsub.s32 %v1637, %v1639
    %v1641 = vrot.slane %v1633, %v1640
    %v1643 = vunpack.c.l.s4 1934713408
    %v1644 = vunpack.c.0.s8 %v1643
    %v1645 = vlaneseq
    %v1646 = vshrl.u32 %v1645, 7
    %v1647 = vsub.s32 %v1644, %v1646
    %v1648 = vrot.slane %v1634, %v1647
    %v1649 = vcombine.low %v1584, %v1600
    %v1650 = vcombine.high %v1584, %v1600
    %v1652 = vunpack.c.l.s4 1934713408
    %v1653 = vunpack.c.0.s8 %v1652
    %v1654 = vlaneseq
    %v1655 = vshrl.u32 %v1654, 7
    %v1656 = vsub.s32 %v1653, %v1655
    %v1657 = vrot.slane %v1649, %v1656
    %v1659 = vunpack.c.l.s4 1934713408
    %v1660 = vunpack.c.0.s8 %v1659
    %v1661 = vlaneseq
    %v1662 = vshrl.u32 %v1661, 7
    %v1663 = vsub.s32 %v1660, %v1662
    %v1664 = vrot.slane %v1650, %v1663
    %v1665 = vcombine.low %v1609, %v1641
    %v1666 = vcombine.high %v1609, %v1641
    %v1667 = vcombine.low %v1616, %v1648
    %v1668 = vcombine.high %v1616, %v1648
    %v1669 = vcombine.low %v1625, %v1657
    %v1670 = vcombine.high %v1625, %v1657
    %v1671 = vcombine.low %v1632, %v1664
    %v1672 = vcombine.high %v1632, %v1664
    %v1673 = vcombine.low %v905, %v969
    %v1674 = vcombine.high %v905, %v969
    %v1676 = vunpack.c.l.s4 1983009808
    %v1677 = vunpack.c.0.s8 %v1676
    %v1678 = vlaneseq
    %v1679 = vshrl.u32 %v1678, 7
    %v1680 = vsub.s32 %v1677, %v1679
    %v1681 = vrot.slane %v1673, %v1680
    %v1683 = vunpack.c.l.s4 1983009808
    %v1684 = vunpack.c.0.s8 %v1683
    %v1685 = vlaneseq
    %v1686 = vshrl.u32 %v1685, 7
    %v1687 = vsub.s32 %v1684, %v1686
    %v1688 = vrot.slane %v1674, %v1687
    %v1689 = vcombine.low %v937, %v1001
    %v1690 = vcombine.high %v937, %v1001
    %v1692 = vunpack.c.l.s4 1983009808
    %v1693 = vunpack.c.0.s8 %v1692
    %v1694 = vlaneseq
    %v1695 = vshrl.u32 %v1694, 7
    %v1696 = vsub.s32 %v1693, %v1695
    %v1697 = vrot.slane %v1689, %v1696
    %v1699 = vunpack.c.l.s4 1983009808
    %v1700 = vunpack.c.0.s8 %v1699
    %v1701 = vlaneseq
    %v1702 = vshrl.u32 %v1701, 7
    %v1703 = vsub.s32 %v1700, %v1702
    %v1704 = vrot.slane %v1690, %v1703
    %v1705 = vcombine.low %v1033, %v1097
    %v1706 = vcombine.high %v1033, %v1097
    %v1708 = vunpack.c.l.s4 1983009808
    %v1709 = vunpack.c.0.s8 %v1708
    %v1710 = vlaneseq
    %v1711 = vshrl.u32 %v1710, 7
    %v1712 = vsub.s32 %v1709, %v1711
    %v1713 = vrot.slane %v1705, %v1712
    %v1715 = vunpack.c.l.s4 1983009808
    %v1716 = vunpack.c.0.s8 %v1715
    %v1717 = vlaneseq
    %v1718 = vshrl.u32 %v1717, 7
    %v1719 = vsub.s32 %v1716, %v1718
    %v1720 = vrot.slane %v1706, %v1719
    %v1721 = vcombine.low %v1065, %v1129
    %v1722 = vcombine.high %v1065, %v1129
    %v1724 = vunpack.c.l.s4 1983009808
    %v1725 = vunpack.c.0.s8 %v1724
    %v1726 = vlaneseq
    %v1727 = vshrl.u32 %v1726, 7
    %v1728 = vsub.s32 %v1725, %v1727
    %v1729 = vrot.slane %v1721, %v1728
    %v1731 = vunpack.c.l.s4 1983009808
    %v1732 = vunpack.c.0.s8 %v1731
    %v1733 = vlaneseq
    %v1734 = vshrl.u32 %v1733, 7
    %v1735 = vsub.s32 %v1732, %v1734
    %v1736 = vrot.slane %v1722, %v1735
    %v1737 = vcombine.low %v1681, %v1697
    %v1738 = vcombine.high %v1681, %v1697
    %v1740 = vunpack.c.l.s4 1934713408
    %v1741 = vunpack.c.0.s8 %v1740
    %v1742 = vlaneseq
    %v1743 = vshrl.u32 %v1742, 7
    %v1744 = vsub.s32 %v1741, %v1743
    %v1745 = vrot.slane %v1737, %v1744
    %v1747 = vunpack.c.l.s4 1934713408
    %v1748 = vunpack.c.0.s8 %v1747
    %v1749 = vlaneseq
    %v1750 = vshrl.u32 %v1749, 7
    %v1751 = vsub.s32 %v1748, %v1750
    %v1752 = vrot.slane %v1738, %v1751
    %v1753 = vcombine.low %v1688, %v1704
    %v1754 = vcombine.high %v1688, %v1704
    %v1756 = vunpack.c.l.s4 1934713408
    %v1757 = vunpack.c.0.s8 %v1756
    %v1758 = vlaneseq
    %v1759 = vshrl.u32 %v1758, 7
    %v1760 = vsub.s32 %v1757, %v1759
    %v1761 = vrot.slane %v1753, %v1760
    %v1763 = vunpack.c.l.s4 1934713408
    %v1764 = vunpack.c.0.s8 %v1763
    %v1765 = vlaneseq
    %v1766 = vshrl.u32 %v1765, 7
    %v1767 = vsub.s32 %v1764, %v1766
    %v1768 = vrot.slane %v1754, %v1767
    %v1769 = vcombine.low %v1713, %v1729
    %v1770 = vcombine.high %v1713, %v1729
    %v1772 = vunpack.c.l.s4 1934713408
    %v1773 = vunpack.c.0.s8 %v1772
    %v1774 = vlaneseq
    %v1775 = vshrl.u32 %v1774, 7
    %v1776 = vsub.s32 %v1773, %v1775
    %v1777 = vrot.slane %v1769, %v1776
    %v1779 = vunpack.c.l.s4 1934713408
    %v1780 = vunpack.c.0.s8 %v1779
    %v1781 = vlaneseq
    %v1782 = vshrl.u32 %v1781, 7
    %v1783 = vsub.s32 %v1780, %v1782
    %v1784 = vrot.slane %v1770, %v1783
    %v1785 = vcombine.low %v1720, %v1736
    %v1786 = vcombine.high %v1720, %v1736
    %v1788 = vunpack.c.l.s4 1934713408
    %v1789 = vunpack.c.0.s8 %v1788
    %v1790 = vlaneseq
    %v1791 = vshrl.u32 %v1790, 7
    %v1792 = vsub.s32 %v1789, %v1791
    %v1793 = vrot.slane %v1785, %v1792
    %v1795 = vunpack.c.l.s4 1934713408
    %v1796 = vunpack.c.0.s8 %v1795
    %v1797 = vlaneseq
    %v1798 = vshrl.u32 %v1797, 7
    %v1799 = vsub.s32 %v1796, %v1798
    %v1800 = vrot.slane %v1786, %v1799
    %v1801 = vcombine.low %v1745, %v1777
    %v1802 = vcombine.high %v1745, %v1777
    %v1803 = vcombine.low %v1752, %v1784
    %v1804 = vcombine.high %v1752, %v1784
    %v1805 = vcombine.low %v1761, %v1793
    %v1806 = vcombine.high %v1761, %v1793
    %v1807 = vcombine.low %v1768, %v1800
    %v1808 = vcombine.high %v1768, %v1800
    %v1809 = vcombine.low %v1161, %v1225
    %v1810 = vcombine.high %v1161, %v1225
    %v1812 = vunpack.c.l.s4 1983009808
    %v1813 = vunpack.c.0.s8 %v1812
    %v1814 = vlaneseq
    %v1815 = vshrl.u32 %v1814, 7
    %v1816 = vsub.s32 %v1813, %v1815
    %v1817 = vrot.slane %v1809, %v1816
    %v1819 = vunpack.c.l.s4 1983009808
    %v1820 = vunpack.c.0.s8 %v1819
    %v1821 = vlaneseq
    %v1822 = vshrl.u32 %v1821, 7
    %v1823 = vsub.s32 %v1820, %v1822
    %v1824 = vrot.slane %v1810, %v1823
    %v1825 = vcombine.low %v1193, %v1257
    %v1826 = vcombine.high %v1193, %v1257
    %v1828 = vunpack.c.l.s4 1983009808
    %v1829 = vunpack.c.0.s8 %v1828
    %v1830 = vlaneseq
    %v1831 = vshrl.u32 %v1830, 7
    %v1832 = vsub.s32 %v1829, %v1831
    %v1833 = vrot.slane %v1825, %v1832
    %v1835 = vunpack.c.l.s4 1983009808
    %v1836 = vunpack.c.0.s8 %v1835
    %v1837 = vlaneseq
    %v1838 = vshrl.u32 %v1837, 7
    %v1839 = vsub.s32 %v1836, %v1838
    %v1840 = vrot.slane %v1826, %v1839
    %v1841 = vcombine.low %v1289, %v1353
    %v1842 = vcombine.high %v1289, %v1353
    %v1844 = vunpack.c.l.s4 1983009808
    %v1845 = vunpack.c.0.s8 %v1844
    %v1846 = vlaneseq
    %v1847 = vshrl.u32 %v1846, 7
    %v1848 = vsub.s32 %v1845, %v1847
    %v1849 = vrot.slane %v1841, %v1848
    %v1851 = vunpack.c.l.s4 1983009808
    %v1852 = vunpack.c.0.s8 %v1851
    %v1853 = vlaneseq
    %v1854 = vshrl.u32 %v1853, 7
    %v1855 = vsub.s32 %v1852, %v1854
    %v1856 = vrot.slane %v1842, %v1855
    %v1857 = vcombine.low %v1321, %v1385
    %v1858 = vcombine.high %v1321, %v1385
    %v1860 = vunpack.c.l.s4 1983009808
    %v1861 = vunpack.c.0.s8 %v1860
    %v1862 = vlaneseq
    %v1863 = vshrl.u32 %v1862, 7
    %v1864 = vsub.s32 %v1861, %v1863
    %v1865 = vrot.slane %v1857, %v1864
    %v1867 = vunpack.c.l.s4 1983009808
    %v1868 = vunpack.c.0.s8 %v1867
    %v1869 = vlaneseq
    %v1870 = vshrl.u32 %v1869, 7
    %v1871 = vsub.s32 %v1868, %v1870
    %v1872 = vrot.slane %v1858, %v1871
    %v1873 = vcombine.low %v1817, %v1833
    %v1874 = vcombine.high %v1817, %v1833
    %v1876 = vunpack.c.l.s4 1934713408
    %v1877 = vunpack.c.0.s8 %v1876
    %v1878 = vlaneseq
    %v1879 = vshrl.u32 %v1878, 7
    %v1880 = vsub.s32 %v1877, %v1879
    %v1881 = vrot.slane %v1873, %v1880
    %v1883 = vunpack.c.l.s4 1934713408
    %v1884 = vunpack.c.0.s8 %v1883
    %v1885 = vlaneseq
    %v1886 = vshrl.u32 %v1885, 7
    %v1887 = vsub.s32 %v1884, %v1886
    %v1888 = vrot.slane %v1874, %v1887
    %v1889 = vcombine.low %v1824, %v1840
    %v1890 = vcombine.high %v1824, %v1840
    %v1892 = vunpack.c.l.s4 1934713408
    %v1893 = vunpack.c.0.s8 %v1892
    %v1894 = vlaneseq
    %v1895 = vshrl.u32 %v1894, 7
    %v1896 = vsub.s32 %v1893, %v1895
    %v1897 = vrot.slane %v1889, %v1896
    %v1899 = vunpack.c.l.s4 1934713408
    %v1900 = vunpack.c.0.s8 %v1899
    %v1901 = vlaneseq
    %v1902 = vshrl.u32 %v1901, 7
    %v1903 = vsub.s32 %v1900, %v1902
    %v1904 = vrot.slane %v1890, %v1903
    %v1905 = vcombine.low %v1849, %v1865
    %v1906 = vcombine.high %v1849, %v1865
    %v1908 = vunpack.c.l.s4 1934713408
    %v1909 = vunpack.c.0.s8 %v1908
    %v1910 = vlaneseq
    %v1911 = vshrl.u32 %v1910, 7
    %v1912 = vsub.s32 %v1909, %v1911
    %v1913 = vrot.slane %v1905, %v1912
    %v1915 = vunpack.c.l.s4 1934713408
    %v1916 = vunpack.c.0.s8 %v1915
    %v1917 = vlaneseq
    %v1918 = vshrl.u32 %v1917, 7
    %v1919 = vsub.s32 %v1916, %v1918
    %v1920 = vrot.slane %v1906, %v1919
    %v1921 = vcombine.low %v1856, %v1872
    %v1922 = vcombine.high %v1856, %v1872
    %v1924 = vunpack.c.l.s4 1934713408
    %v1925 = vunpack.c.0.s8 %v1924
    %v1926 = vlaneseq
    %v1927 = vshrl.u32 %v1926, 7
    %v1928 = vsub.s32 %v1925, %v1927
    %v1929 = vrot.slane %v1921, %v1928
    %v1931 = vunpack.c.l.s4 1934713408
    %v1932 = vunpack.c.0.s8 %v1931
    %v1933 = vlaneseq
    %v1934 = vshrl.u32 %v1933, 7
    %v1935 = vsub.s32 %v1932, %v1934
    %v1936 = vrot.slane %v1922, %v1935
    %v1937 = vcombine.low %v1881, %v1913
    %v1938 = vcombine.high %v1881, %v1913
    %v1939 = vcombine.low %v1888, %v1920
    %v1940 = vcombine.high %v1888, %v1920
    %v1941 = vcombine.low %v1897, %v1929
    %v1942 = vcombine.high %v1897, %v1929
    %v1943 = vcombine.low %v1904, %v1936
    %v1944 = vcombine.high %v1904, %v1936
    %1945 = vxpose.xlu0.b32.start [1/16] %v15, 128
    %1946 = vxpose.xlu0.b32.cont [2/16] %v16, 128
    %1947 = vxpose.xlu0.b32.cont [3/16] %v17, 128
    %1948 = vxpose.xlu0.b32.cont [4/16] %v18, 128
    %1949 = vxpose.xlu0.b32.cont [5/16] 0.0, 128
    %1950 = vxpose.xlu0.b32.cont [6/16] 0.0, 128
    %1951 = vxpose.xlu0.b32.cont [7/16] 0.0, 128
    %1952 = vxpose.xlu0.b32.cont [8/16] 0.0, 128
    %1953 = vxpose.xlu0.b32.cont [9/16] 0.0, 128
    %1954 = vxpose.xlu0.b32.cont [10/16] 0.0, 128
    %1955 = vxpose.xlu0.b32.cont [11/16] 0.0, 128
    %1956 = vxpose.xlu0.b32.cont [12/16] 0.0, 128
    %1957 = vxpose.xlu0.b32.cont [13/16] 0.0, 128
    %1958 = vxpose.xlu0.b32.cont [14/16] 0.0, 128
    %1959 = vxpose.xlu0.b32.cont [15/16] 0.0, 128
    %1960 = vxpose.xlu0.b32.end [16/16] 0.0, 128
    %v1961 = vpop.trf.xlu0
    %v1962 = vpop.trf.xlu0
    %v1963 = vpop.trf.xlu0
    %v1964 = vpop.trf.xlu0
    %v1965 = vpop.trf.xlu0
    %v1966 = vpop.trf.xlu0
    %v1967 = vpop.trf.xlu0
    %v1968 = vpop.trf.xlu0
    %v1969 = vpop.trf.xlu0
    %v1970 = vpop.trf.xlu0
    %v1971 = vpop.trf.xlu0
    %v1972 = vpop.trf.xlu0
    %v1973 = vpop.trf.xlu0
    %v1974 = vpop.trf.xlu0
    %v1975 = vpop.trf.xlu0
    %v1976 = vpop.trf.xlu0
    %vm1977 = vcmask 261120
    %v1979 = vsel %vm1977, %v1961, 0
    %v1982 = vsel %vm1977, %v1962, 0
    %1984 = vmatprep.subr.mxu0 0.0
    %1985 = vmatpush1.msra.mxu0 0.0
    %1986 = vmatprep.subr.mxu0 0.0
    %1987 = vmatpush1.msra.mxu0 0.0
    %1988 = vmatprep.subr.mxu0 0.0
    %1989 = vmatpush1.msra.mxu0 0.0
    %1990 = vmatprep.subr.mxu0 0.0
    %1991 = vmatpush1.msra.mxu0 0.0
    %1992 = vmatprep.subr.mxu0 0.0
    %1993 = vmatpush1.msra.mxu0 0.0
    %1994 = vmatprep.subr.mxu0 0.0
    %1995 = vmatpush1.msra.mxu0 0.0
    %1996 = vmatprep.subr.mxu0 0.0
    %1997 = vmatpush1.msra.mxu0 0.0
    %1998 = vmatprep.subr.mxu0 0.0
    %1999 = vmatpush1.msra.mxu0 0.0
    %2000 = vmatprep.subr.mxu0 0.0
    %2001 = vmatpush1.msra.mxu0 0.0
    %2002 = vmatprep.subr.mxu0 0.0
    %2003 = vmatpush1.msra.mxu0 0.0
    %2004 = vmatprep.subr.mxu0 0.0
    %2005 = vmatpush1.msra.mxu0 0.0
    %2006 = vmatprep.subr.mxu0 0.0
    %2007 = vmatpush1.msra.mxu0 0.0
    %2008 = vmatprep.subr.mxu0 0.0
    %2009 = vmatpush1.msra.mxu0 %v1937
    %2010 = vmatprep.subr.mxu0 0.0
    %2011 = vmatpush1.msra.mxu0 %v1801
    %2012 = vmatprep.subr.mxu0 0.0
    %2013 = vmatpush1.msra.mxu0 %v1665
    %2014 = vmatprep.subr.mxu0 0.0
    %2015 = vmatpush1.msra.mxu0 %v1529
    %2016 = vmatprep.subr.mxu0 0.0
    %2017 = vmatpush2.msra.mxu0 0.0
    %2018 = vmatprep.subr.mxu0 0.0
    %2019 = vmatpush2.msra.mxu0 0.0
    %2020 = vmatprep.subr.mxu0 0.0
    %2021 = vmatpush2.msra.mxu0 0.0
    %2022 = vmatprep.subr.mxu0 0.0
    %2023 = vmatpush2.msra.mxu0 0.0
    %2024 = vmatprep.subr.mxu0 0.0
    %2025 = vmatpush2.msra.mxu0 0.0
    %2026 = vmatprep.subr.mxu0 0.0
    %2027 = vmatpush2.msra.mxu0 0.0
    %2028 = vmatprep.subr.mxu0 0.0
    %2029 = vmatpush2.msra.mxu0 0.0
    %2030 = vmatprep.subr.mxu0 0.0
    %2031 = vmatpush2.msra.mxu0 0.0
    %2032 = vmatprep.subr.mxu0 0.0
    %2033 = vmatpush2.msra.mxu0 0.0
    %2034 = vmatprep.subr.mxu0 0.0
    %2035 = vmatpush2.msra.mxu0 0.0
    %2036 = vmatprep.subr.mxu0 0.0
    %2037 = vmatpush2.msra.mxu0 0.0
    %2038 = vmatprep.subr.mxu0 0.0
    %2039 = vmatpush2.msra.mxu0 0.0
    %2040 = vmatprep.subr.mxu0 0.0
    %2041 = vmatpush2.msra.mxu0 0.0
    %2042 = vmatprep.subr.mxu0 0.0
    %2043 = vmatpush2.msra.mxu0 0.0
    %2044 = vmatprep.subr.mxu0 0.0
    %2045 = vmatpush2.msra.mxu0 0.0
    %2046 = vmatprep.subr.mxu0 0.0
    %2047 = vmatpush2.msra.mxu0 0.0
    %2048 = vmatprep.mubr.f32.mxu0 0.0
    %2049 = vmatmul.mubr.f32.gmra.mxu0 %v1979
    %v2050 = vpop.f32.mrf.mxu0
    %v2051 = vadd.f32 0.0, %v2050
    %v2052 = vpop.f32.mrf.mxu0
    %2053 = vmatprep.mubr.f32.mxu0 0.0
    %2054 = vmatmul.mubr.f32.gmra.mxu0 %v1982
    %v2055 = vpop.f32.mrf.mxu0
    %v2056 = vadd.f32 0.0, %v2055
    %v2057 = vpop.f32.mrf.mxu0
    %2058 = vdwg.mxu0
    %2059 = vxpose.xlu0.b32.start [1/16] %v19, 128
    %2060 = vxpose.xlu0.b32.cont [2/16] %v20, 128
    %2061 = vxpose.xlu0.b32.cont [3/16] %v21, 128
    %2062 = vxpose.xlu0.b32.cont [4/16] %v22, 128
    %2063 = vxpose.xlu0.b32.cont [5/16] 0.0, 128
    %2064 = vxpose.xlu0.b32.cont [6/16] 0.0, 128
    %2065 = vxpose.xlu0.b32.cont [7/16] 0.0, 128
    %2066 = vxpose.xlu0.b32.cont [8/16] 0.0, 128
    %2067 = vxpose.xlu0.b32.cont [9/16] 0.0, 128
    %2068 = vxpose.xlu0.b32.cont [10/16] 0.0, 128
    %2069 = vxpose.xlu0.b32.cont [11/16] 0.0, 128
    %2070 = vxpose.xlu0.b32.cont [12/16] 0.0, 128
    %2071 = vxpose.xlu0.b32.cont [13/16] 0.0, 128
    %2072 = vxpose.xlu0.b32.cont [14/16] 0.0, 128
    %2073 = vxpose.xlu0.b32.cont [15/16] 0.0, 128
    %2074 = vxpose.xlu0.b32.end [16/16] 0.0, 128
    %v2075 = vpop.trf.xlu0
    %v2076 = vpop.trf.xlu0
    %v2077 = vpop.trf.xlu0
    %v2078 = vpop.trf.xlu0
    %v2079 = vpop.trf.xlu0
    %v2080 = vpop.trf.xlu0
    %v2081 = vpop.trf.xlu0
    %v2082 = vpop.trf.xlu0
    %v2083 = vpop.trf.xlu0
    %v2084 = vpop.trf.xlu0
    %v2085 = vpop.trf.xlu0
    %v2086 = vpop.trf.xlu0
    %v2087 = vpop.trf.xlu0
    %v2088 = vpop.trf.xlu0
    %v2089 = vpop.trf.xlu0
    %v2090 = vpop.trf.xlu0
    %v2092 = vsel %vm1977, %v2075, 0
    %v2095 = vsel %vm1977, %v2076, 0
    %2097 = vmatprep.subr.mxu0 0.0
    %2098 = vmatpush1.msra.mxu0 0.0
    %2099 = vmatprep.subr.mxu0 0.0
    %2100 = vmatpush1.msra.mxu0 0.0
    %2101 = vmatprep.subr.mxu0 0.0
    %2102 = vmatpush1.msra.mxu0 0.0
    %2103 = vmatprep.subr.mxu0 0.0
    %2104 = vmatpush1.msra.mxu0 0.0
    %2105 = vmatprep.subr.mxu0 0.0
    %2106 = vmatpush1.msra.mxu0 0.0
    %2107 = vmatprep.subr.mxu0 0.0
    %2108 = vmatpush1.msra.mxu0 0.0
    %2109 = vmatprep.subr.mxu0 0.0
    %2110 = vmatpush1.msra.mxu0 0.0
    %2111 = vmatprep.subr.mxu0 0.0
    %2112 = vmatpush1.msra.mxu0 0.0
    %2113 = vmatprep.subr.mxu0 0.0
    %2114 = vmatpush1.msra.mxu0 0.0
    %2115 = vmatprep.subr.mxu0 0.0
    %2116 = vmatpush1.msra.mxu0 0.0
    %2117 = vmatprep.subr.mxu0 0.0
    %2118 = vmatpush1.msra.mxu0 0.0
    %2119 = vmatprep.subr.mxu0 0.0
    %2120 = vmatpush1.msra.mxu0 0.0
    %2121 = vmatprep.subr.mxu0 0.0
    %2122 = vmatpush1.msra.mxu0 %v1938
    %2123 = vmatprep.subr.mxu0 0.0
    %2124 = vmatpush1.msra.mxu0 %v1802
    %2125 = vmatprep.subr.mxu0 0.0
    %2126 = vmatpush1.msra.mxu0 %v1666
    %2127 = vmatprep.subr.mxu0 0.0
    %2128 = vmatpush1.msra.mxu0 %v1530
    %2129 = vmatprep.subr.mxu0 0.0
    %2130 = vmatpush2.msra.mxu0 0.0
    %2131 = vmatprep.subr.mxu0 0.0
    %2132 = vmatpush2.msra.mxu0 0.0
    %2133 = vmatprep.subr.mxu0 0.0
    %2134 = vmatpush2.msra.mxu0 0.0
    %2135 = vmatprep.subr.mxu0 0.0
    %2136 = vmatpush2.msra.mxu0 0.0
    %2137 = vmatprep.subr.mxu0 0.0
    %2138 = vmatpush2.msra.mxu0 0.0
    %2139 = vmatprep.subr.mxu0 0.0
    %2140 = vmatpush2.msra.mxu0 0.0
    %2141 = vmatprep.subr.mxu0 0.0
    %2142 = vmatpush2.msra.mxu0 0.0
    %2143 = vmatprep.subr.mxu0 0.0
    %2144 = vmatpush2.msra.mxu0 0.0
    %2145 = vmatprep.subr.mxu0 0.0
    %2146 = vmatpush2.msra.mxu0 0.0
    %2147 = vmatprep.subr.mxu0 0.0
    %2148 = vmatpush2.msra.mxu0 0.0
    %2149 = vmatprep.subr.mxu0 0.0
    %2150 = vmatpush2.msra.mxu0 0.0
    %2151 = vmatprep.subr.mxu0 0.0
    %2152 = vmatpush2.msra.mxu0 0.0
    %2153 = vmatprep.subr.mxu0 0.0
    %2154 = vmatpush2.msra.mxu0 0.0
    %2155 = vmatprep.subr.mxu0 0.0
    %2156 = vmatpush2.msra.mxu0 0.0
    %2157 = vmatprep.subr.mxu0 0.0
    %2158 = vmatpush2.msra.mxu0 0.0
    %2159 = vmatprep.subr.mxu0 0.0
    %2160 = vmatpush2.msra.mxu0 0.0
    %2161 = vmatprep.mubr.f32.mxu0 0.0
    %2162 = vmatmul.mubr.f32.gmra.mxu0 %v2092
    %v2163 = vpop.f32.mrf.mxu0
    %v2164 = vadd.f32 0.0, %v2163
    %v2165 = vpop.f32.mrf.mxu0
    %2166 = vmatprep.mubr.f32.mxu0 0.0
    %2167 = vmatmul.mubr.f32.gmra.mxu0 %v2095
    %v2168 = vpop.f32.mrf.mxu0
    %v2169 = vadd.f32 0.0, %v2168
    %v2170 = vpop.f32.mrf.mxu0
    %2171 = vdwg.mxu0
    %2172 = vxpose.xlu0.b32.start [1/16] %v23, 128
    %2173 = vxpose.xlu0.b32.cont [2/16] %v24, 128
    %2174 = vxpose.xlu0.b32.cont [3/16] %v25, 128
    %2175 = vxpose.xlu0.b32.cont [4/16] %v26, 128
    %2176 = vxpose.xlu0.b32.cont [5/16] 0.0, 128
    %2177 = vxpose.xlu0.b32.cont [6/16] 0.0, 128
    %2178 = vxpose.xlu0.b32.cont [7/16] 0.0, 128
    %2179 = vxpose.xlu0.b32.cont [8/16] 0.0, 128
    %2180 = vxpose.xlu0.b32.cont [9/16] 0.0, 128
    %2181 = vxpose.xlu0.b32.cont [10/16] 0.0, 128
    %2182 = vxpose.xlu0.b32.cont [11/16] 0.0, 128
    %2183 = vxpose.xlu0.b32.cont [12/16] 0.0, 128
    %2184 = vxpose.xlu0.b32.cont [13/16] 0.0, 128
    %2185 = vxpose.xlu0.b32.cont [14/16] 0.0, 128
    %2186 = vxpose.xlu0.b32.cont [15/16] 0.0, 128
    %2187 = vxpose.xlu0.b32.end [16/16] 0.0, 128
    %v2188 = vpop.trf.xlu0
    %v2189 = vpop.trf.xlu0
    %v2190 = vpop.trf.xlu0
    %v2191 = vpop.trf.xlu0
    %v2192 = vpop.trf.xlu0
    %v2193 = vpop.trf.xlu0
    %v2194 = vpop.trf.xlu0
    %v2195 = vpop.trf.xlu0
    %v2196 = vpop.trf.xlu0
    %v2197 = vpop.trf.xlu0
    %v2198 = vpop.trf.xlu0
    %v2199 = vpop.trf.xlu0
    %v2200 = vpop.trf.xlu0
    %v2201 = vpop.trf.xlu0
    %v2202 = vpop.trf.xlu0
    %v2203 = vpop.trf.xlu0
    %v2205 = vsel %vm1977, %v2188, 0
    %v2208 = vsel %vm1977, %v2189, 0
    %2210 = vmatprep.subr.mxu0 0.0
    %2211 = vmatpush1.msra.mxu0 0.0
    %2212 = vmatprep.subr.mxu0 0.0
    %2213 = vmatpush1.msra.mxu0 0.0
    %2214 = vmatprep.subr.mxu0 0.0
    %2215 = vmatpush1.msra.mxu0 0.0
    %2216 = vmatprep.subr.mxu0 0.0
    %2217 = vmatpush1.msra.mxu0 0.0
    %2218 = vmatprep.subr.mxu0 0.0
    %2219 = vmatpush1.msra.mxu0 0.0
    %2220 = vmatprep.subr.mxu0 0.0
    %2221 = vmatpush1.msra.mxu0 0.0
    %2222 = vmatprep.subr.mxu0 0.0
    %2223 = vmatpush1.msra.mxu0 0.0
    %2224 = vmatprep.subr.mxu0 0.0
    %2225 = vmatpush1.msra.mxu0 0.0
    %2226 = vmatprep.subr.mxu0 0.0
    %2227 = vmatpush1.msra.mxu0 0.0
    %2228 = vmatprep.subr.mxu0 0.0
    %2229 = vmatpush1.msra.mxu0 0.0
    %2230 = vmatprep.subr.mxu0 0.0
    %2231 = vmatpush1.msra.mxu0 0.0
    %2232 = vmatprep.subr.mxu0 0.0
    %2233 = vmatpush1.msra.mxu0 0.0
    %2234 = vmatprep.subr.mxu0 0.0
    %2235 = vmatpush1.msra.mxu0 %v1939
    %2236 = vmatprep.subr.mxu0 0.0
    %2237 = vmatpush1.msra.mxu0 %v1803
    %2238 = vmatprep.subr.mxu0 0.0
    %2239 = vmatpush1.msra.mxu0 %v1667
    %2240 = vmatprep.subr.mxu0 0.0
    %2241 = vmatpush1.msra.mxu0 %v1531
    %2242 = vmatprep.subr.mxu0 0.0
    %2243 = vmatpush2.msra.mxu0 0.0
    %2244 = vmatprep.subr.mxu0 0.0
    %2245 = vmatpush2.msra.mxu0 0.0
    %2246 = vmatprep.subr.mxu0 0.0
    %2247 = vmatpush2.msra.mxu0 0.0
    %2248 = vmatprep.subr.mxu0 0.0
    %2249 = vmatpush2.msra.mxu0 0.0
    %2250 = vmatprep.subr.mxu0 0.0
    %2251 = vmatpush2.msra.mxu0 0.0
    %2252 = vmatprep.subr.mxu0 0.0
    %2253 = vmatpush2.msra.mxu0 0.0
    %2254 = vmatprep.subr.mxu0 0.0
    %2255 = vmatpush2.msra.mxu0 0.0
    %2256 = vmatprep.subr.mxu0 0.0
    %2257 = vmatpush2.msra.mxu0 0.0
    %2258 = vmatprep.subr.mxu0 0.0
    %2259 = vmatpush2.msra.mxu0 0.0
    %2260 = vmatprep.subr.mxu0 0.0
    %2261 = vmatpush2.msra.mxu0 0.0
    %2262 = vmatprep.subr.mxu0 0.0
    %2263 = vmatpush2.msra.mxu0 0.0
    %2264 = vmatprep.subr.mxu0 0.0
    %2265 = vmatpush2.msra.mxu0 0.0
    %2266 = vmatprep.subr.mxu0 0.0
    %2267 = vmatpush2.msra.mxu0 0.0
    %2268 = vmatprep.subr.mxu0 0.0
    %2269 = vmatpush2.msra.mxu0 0.0
    %2270 = vmatprep.subr.mxu0 0.0
    %2271 = vmatpush2.msra.mxu0 0.0
    %2272 = vmatprep.subr.mxu0 0.0
    %2273 = vmatpush2.msra.mxu0 0.0
    %2274 = vmatprep.mubr.f32.mxu0 0.0
    %2275 = vmatmul.mubr.f32.gmra.mxu0 %v2205
    %v2276 = vpop.f32.mrf.mxu0
    %v2277 = vadd.f32 0.0, %v2276
    %v2278 = vpop.f32.mrf.mxu0
    %2279 = vmatprep.mubr.f32.mxu0 0.0
    %2280 = vmatmul.mubr.f32.gmra.mxu0 %v2208
    %v2281 = vpop.f32.mrf.mxu0
    %v2282 = vadd.f32 0.0, %v2281
    %v2283 = vpop.f32.mrf.mxu0
    %2284 = vdwg.mxu0
    %2285 = vxpose.xlu0.b32.start [1/16] %v27, 128
    %2286 = vxpose.xlu0.b32.cont [2/16] %v28, 128
    %2287 = vxpose.xlu0.b32.cont [3/16] %v29, 128
    %2288 = vxpose.xlu0.b32.cont [4/16] %v30, 128
    %2289 = vxpose.xlu0.b32.cont [5/16] 0.0, 128
    %2290 = vxpose.xlu0.b32.cont [6/16] 0.0, 128
    %2291 = vxpose.xlu0.b32.cont [7/16] 0.0, 128
    %2292 = vxpose.xlu0.b32.cont [8/16] 0.0, 128
    %2293 = vxpose.xlu0.b32.cont [9/16] 0.0, 128
    %2294 = vxpose.xlu0.b32.cont [10/16] 0.0, 128
    %2295 = vxpose.xlu0.b32.cont [11/16] 0.0, 128
    %2296 = vxpose.xlu0.b32.cont [12/16] 0.0, 128
    %2297 = vxpose.xlu0.b32.cont [13/16] 0.0, 128
    %2298 = vxpose.xlu0.b32.cont [14/16] 0.0, 128
    %2299 = vxpose.xlu0.b32.cont [15/16] 0.0, 128
    %2300 = vxpose.xlu0.b32.end [16/16] 0.0, 128
    %v2301 = vpop.trf.xlu0
    %v2302 = vpop.trf.xlu0
    %v2303 = vpop.trf.xlu0
    %v2304 = vpop.trf.xlu0
    %v2305 = vpop.trf.xlu0
    %v2306 = vpop.trf.xlu0
    %v2307 = vpop.trf.xlu0
    %v2308 = vpop.trf.xlu0
    %v2309 = vpop.trf.xlu0
    %v2310 = vpop.trf.xlu0
    %v2311 = vpop.trf.xlu0
    %v2312 = vpop.trf.xlu0
    %v2313 = vpop.trf.xlu0
    %v2314 = vpop.trf.xlu0
    %v2315 = vpop.trf.xlu0
    %v2316 = vpop.trf.xlu0
    %v2318 = vsel %vm1977, %v2301, 0
    %v2321 = vsel %vm1977, %v2302, 0
    %2323 = vmatprep.subr.mxu0 0.0
    %2324 = vmatpush1.msra.mxu0 0.0
    %2325 = vmatprep.subr.mxu0 0.0
    %2326 = vmatpush1.msra.mxu0 0.0
    %2327 = vmatprep.subr.mxu0 0.0
    %2328 = vmatpush1.msra.mxu0 0.0
    %2329 = vmatprep.subr.mxu0 0.0
    %2330 = vmatpush1.msra.mxu0 0.0
    %2331 = vmatprep.subr.mxu0 0.0
    %2332 = vmatpush1.msra.mxu0 0.0
    %2333 = vmatprep.subr.mxu0 0.0
    %2334 = vmatpush1.msra.mxu0 0.0
    %2335 = vmatprep.subr.mxu0 0.0
    %2336 = vmatpush1.msra.mxu0 0.0
    %2337 = vmatprep.subr.mxu0 0.0
    %2338 = vmatpush1.msra.mxu0 0.0
    %2339 = vmatprep.subr.mxu0 0.0
    %2340 = vmatpush1.msra.mxu0 0.0
    %2341 = vmatprep.subr.mxu0 0.0
    %2342 = vmatpush1.msra.mxu0 0.0
    %2343 = vmatprep.subr.mxu0 0.0
    %2344 = vmatpush1.msra.mxu0 0.0
    %2345 = vmatprep.subr.mxu0 0.0
    %2346 = vmatpush1.msra.mxu0 0.0
    %2347 = vmatprep.subr.mxu0 0.0
    %2348 = vmatpush1.msra.mxu0 %v1940
    %2349 = vmatprep.subr.mxu0 0.0
    %2350 = vmatpush1.msra.mxu0 %v1804
    %2351 = vmatprep.subr.mxu0 0.0
    %2352 = vmatpush1.msra.mxu0 %v1668
    %2353 = vmatprep.subr.mxu0 0.0
    %2354 = vmatpush1.msra.mxu0 %v1532
    %2355 = vmatprep.subr.mxu0 0.0
    %2356 = vmatpush2.msra.mxu0 0.0
    %2357 = vmatprep.subr.mxu0 0.0
    %2358 = vmatpush2.msra.mxu0 0.0
    %2359 = vmatprep.subr.mxu0 0.0
    %2360 = vmatpush2.msra.mxu0 0.0
    %2361 = vmatprep.subr.mxu0 0.0
    %2362 = vmatpush2.msra.mxu0 0.0
    %2363 = vmatprep.subr.mxu0 0.0
    %2364 = vmatpush2.msra.mxu0 0.0
    %2365 = vmatprep.subr.mxu0 0.0
    %2366 = vmatpush2.msra.mxu0 0.0
    %2367 = vmatprep.subr.mxu0 0.0
    %2368 = vmatpush2.msra.mxu0 0.0
    %2369 = vmatprep.subr.mxu0 0.0
    %2370 = vmatpush2.msra.mxu0 0.0
    %2371 = vmatprep.subr.mxu0 0.0
    %2372 = vmatpush2.msra.mxu0 0.0
    %2373 = vmatprep.subr.mxu0 0.0
    %2374 = vmatpush2.msra.mxu0 0.0
    %2375 = vmatprep.subr.mxu0 0.0
    %2376 = vmatpush2.msra.mxu0 0.0
    %2377 = vmatprep.subr.mxu0 0.0
    %2378 = vmatpush2.msra.mxu0 0.0
    %2379 = vmatprep.subr.mxu0 0.0
    %2380 = vmatpush2.msra.mxu0 0.0
    %2381 = vmatprep.subr.mxu0 0.0
    %2382 = vmatpush2.msra.mxu0 0.0
    %2383 = vmatprep.subr.mxu0 0.0
    %2384 = vmatpush2.msra.mxu0 0.0
    %2385 = vmatprep.subr.mxu0 0.0
    %2386 = vmatpush2.msra.mxu0 0.0
    %2387 = vmatprep.mubr.f32.mxu0 0.0
    %2388 = vmatmul.mubr.f32.gmra.mxu0 %v2318
    %v2389 = vpop.f32.mrf.mxu0
    %v2390 = vadd.f32 0.0, %v2389
    %v2391 = vpop.f32.mrf.mxu0
    %2392 = vmatprep.mubr.f32.mxu0 0.0
    %2393 = vmatmul.mubr.f32.gmra.mxu0 %v2321
    %v2394 = vpop.f32.mrf.mxu0
    %v2395 = vadd.f32 0.0, %v2394
    %v2396 = vpop.f32.mrf.mxu0
    %2397 = vdwg.mxu0
    %2398 = vxpose.xlu0.b32.start [1/16] %v31, 128
    %2399 = vxpose.xlu0.b32.cont [2/16] %v32, 128
    %2400 = vxpose.xlu0.b32.cont [3/16] %v33, 128
    %2401 = vxpose.xlu0.b32.cont [4/16] %v34, 128
    %2402 = vxpose.xlu0.b32.cont [5/16] 0.0, 128
    %2403 = vxpose.xlu0.b32.cont [6/16] 0.0, 128
    %2404 = vxpose.xlu0.b32.cont [7/16] 0.0, 128
    %2405 = vxpose.xlu0.b32.cont [8/16] 0.0, 128
    %2406 = vxpose.xlu0.b32.cont [9/16] 0.0, 128
    %2407 = vxpose.xlu0.b32.cont [10/16] 0.0, 128
    %2408 = vxpose.xlu0.b32.cont [11/16] 0.0, 128
    %2409 = vxpose.xlu0.b32.cont [12/16] 0.0, 128
    %2410 = vxpose.xlu0.b32.cont [13/16] 0.0, 128
    %2411 = vxpose.xlu0.b32.cont [14/16] 0.0, 128
    %2412 = vxpose.xlu0.b32.cont [15/16] 0.0, 128
    %2413 = vxpose.xlu0.b32.end [16/16] 0.0, 128
    %v2414 = vpop.trf.xlu0
    %v2415 = vpop.trf.xlu0
    %v2416 = vpop.trf.xlu0
    %v2417 = vpop.trf.xlu0
    %v2418 = vpop.trf.xlu0
    %v2419 = vpop.trf.xlu0
    %v2420 = vpop.trf.xlu0
    %v2421 = vpop.trf.xlu0
    %v2422 = vpop.trf.xlu0
    %v2423 = vpop.trf.xlu0
    %v2424 = vpop.trf.xlu0
    %v2425 = vpop.trf.xlu0
    %v2426 = vpop.trf.xlu0
    %v2427 = vpop.trf.xlu0
    %v2428 = vpop.trf.xlu0
    %v2429 = vpop.trf.xlu0
    %v2431 = vsel %vm1977, %v2414, 0
    %v2434 = vsel %vm1977, %v2415, 0
    %2436 = vmatprep.subr.mxu0 0.0
    %2437 = vmatpush1.msra.mxu0 0.0
    %2438 = vmatprep.subr.mxu0 0.0
    %2439 = vmatpush1.msra.mxu0 0.0
    %2440 = vmatprep.subr.mxu0 0.0
    %2441 = vmatpush1.msra.mxu0 0.0
    %2442 = vmatprep.subr.mxu0 0.0
    %2443 = vmatpush1.msra.mxu0 0.0
    %2444 = vmatprep.subr.mxu0 0.0
    %2445 = vmatpush1.msra.mxu0 0.0
    %2446 = vmatprep.subr.mxu0 0.0
    %2447 = vmatpush1.msra.mxu0 0.0
    %2448 = vmatprep.subr.mxu0 0.0
    %2449 = vmatpush1.msra.mxu0 0.0
    %2450 = vmatprep.subr.mxu0 0.0
    %2451 = vmatpush1.msra.mxu0 0.0
    %2452 = vmatprep.subr.mxu0 0.0
    %2453 = vmatpush1.msra.mxu0 0.0
    %2454 = vmatprep.subr.mxu0 0.0
    %2455 = vmatpush1.msra.mxu0 0.0
    %2456 = vmatprep.subr.mxu0 0.0
    %2457 = vmatpush1.msra.mxu0 0.0
    %2458 = vmatprep.subr.mxu0 0.0
    %2459 = vmatpush1.msra.mxu0 0.0
    %2460 = vmatprep.subr.mxu0 0.0
    %2461 = vmatpush1.msra.mxu0 %v1941
    %2462 = vmatprep.subr.mxu0 0.0
    %2463 = vmatpush1.msra.mxu0 %v1805
    %2464 = vmatprep.subr.mxu0 0.0
    %2465 = vmatpush1.msra.mxu0 %v1669
    %2466 = vmatprep.subr.mxu0 0.0
    %2467 = vmatpush1.msra.mxu0 %v1533
    %2468 = vmatprep.subr.mxu0 0.0
    %2469 = vmatpush2.msra.mxu0 0.0
    %2470 = vmatprep.subr.mxu0 0.0
    %2471 = vmatpush2.msra.mxu0 0.0
    %2472 = vmatprep.subr.mxu0 0.0
    %2473 = vmatpush2.msra.mxu0 0.0
    %2474 = vmatprep.subr.mxu0 0.0
    %2475 = vmatpush2.msra.mxu0 0.0
    %2476 = vmatprep.subr.mxu0 0.0
    %2477 = vmatpush2.msra.mxu0 0.0
    %2478 = vmatprep.subr.mxu0 0.0
    %2479 = vmatpush2.msra.mxu0 0.0
    %2480 = vmatprep.subr.mxu0 0.0
    %2481 = vmatpush2.msra.mxu0 0.0
    %2482 = vmatprep.subr.mxu0 0.0
    %2483 = vmatpush2.msra.mxu0 0.0
    %2484 = vmatprep.subr.mxu0 0.0
    %2485 = vmatpush2.msra.mxu0 0.0
    %2486 = vmatprep.subr.mxu0 0.0
    %2487 = vmatpush2.msra.mxu0 0.0
    %2488 = vmatprep.subr.mxu0 0.0
    %2489 = vmatpush2.msra.mxu0 0.0
    %2490 = vmatprep.subr.mxu0 0.0
    %2491 = vmatpush2.msra.mxu0 0.0
    %2492 = vmatprep.subr.mxu0 0.0
    %2493 = vmatpush2.msra.mxu0 0.0
    %2494 = vmatprep.subr.mxu0 0.0
    %2495 = vmatpush2.msra.mxu0 0.0
    %2496 = vmatprep.subr.mxu0 0.0
    %2497 = vmatpush2.msra.mxu0 0.0
    %2498 = vmatprep.subr.mxu0 0.0
    %2499 = vmatpush2.msra.mxu0 0.0
    %2500 = vmatprep.mubr.f32.mxu0 0.0
    %2501 = vmatmul.mubr.f32.gmra.mxu0 %v2431
    %v2502 = vpop.f32.mrf.mxu0
    %v2503 = vadd.f32 0.0, %v2502
    %v2504 = vpop.f32.mrf.mxu0
    %2505 = vmatprep.mubr.f32.mxu0 0.0
    %2506 = vmatmul.mubr.f32.gmra.mxu0 %v2434
    %v2507 = vpop.f32.mrf.mxu0
    %v2508 = vadd.f32 0.0, %v2507
    %v2509 = vpop.f32.mrf.mxu0
    %2510 = vdwg.mxu0
    %2511 = vxpose.xlu0.b32.start [1/16] %v35, 128
    %2512 = vxpose.xlu0.b32.cont [2/16] %v36, 128
    %2513 = vxpose.xlu0.b32.cont [3/16] %v37, 128
    %2514 = vxpose.xlu0.b32.cont [4/16] %v38, 128
    %2515 = vxpose.xlu0.b32.cont [5/16] 0.0, 128
    %2516 = vxpose.xlu0.b32.cont [6/16] 0.0, 128
    %2517 = vxpose.xlu0.b32.cont [7/16] 0.0, 128
    %2518 = vxpose.xlu0.b32.cont [8/16] 0.0, 128
    %2519 = vxpose.xlu0.b32.cont [9/16] 0.0, 128
    %2520 = vxpose.xlu0.b32.cont [10/16] 0.0, 128
    %2521 = vxpose.xlu0.b32.cont [11/16] 0.0, 128
    %2522 = vxpose.xlu0.b32.cont [12/16] 0.0, 128
    %2523 = vxpose.xlu0.b32.cont [13/16] 0.0, 128
    %2524 = vxpose.xlu0.b32.cont [14/16] 0.0, 128
    %2525 = vxpose.xlu0.b32.cont [15/16] 0.0, 128
    %2526 = vxpose.xlu0.b32.end [16/16] 0.0, 128
    %v2527 = vpop.trf.xlu0
    %v2528 = vpop.trf.xlu0
    %v2529 = vpop.trf.xlu0
    %v2530 = vpop.trf.xlu0
    %v2531 = vpop.trf.xlu0
    %v2532 = vpop.trf.xlu0
    %v2533 = vpop.trf.xlu0
    %v2534 = vpop.trf.xlu0
    %v2535 = vpop.trf.xlu0
    %v2536 = vpop.trf.xlu0
    %v2537 = vpop.trf.xlu0
    %v2538 = vpop.trf.xlu0
    %v2539 = vpop.trf.xlu0
    %v2540 = vpop.trf.xlu0
    %v2541 = vpop.trf.xlu0
    %v2542 = vpop.trf.xlu0
    %v2544 = vsel %vm1977, %v2527, 0
    %v2547 = vsel %vm1977, %v2528, 0
    %2549 = vmatprep.subr.mxu0 0.0
    %2550 = vmatpush1.msra.mxu0 0.0
    %2551 = vmatprep.subr.mxu0 0.0
    %2552 = vmatpush1.msra.mxu0 0.0
    %2553 = vmatprep.subr.mxu0 0.0
    %2554 = vmatpush1.msra.mxu0 0.0
    %2555 = vmatprep.subr.mxu0 0.0
    %2556 = vmatpush1.msra.mxu0 0.0
    %2557 = vmatprep.subr.mxu0 0.0
    %2558 = vmatpush1.msra.mxu0 0.0
    %2559 = vmatprep.subr.mxu0 0.0
    %2560 = vmatpush1.msra.mxu0 0.0
    %2561 = vmatprep.subr.mxu0 0.0
    %2562 = vmatpush1.msra.mxu0 0.0
    %2563 = vmatprep.subr.mxu0 0.0
    %2564 = vmatpush1.msra.mxu0 0.0
    %2565 = vmatprep.subr.mxu0 0.0
    %2566 = vmatpush1.msra.mxu0 0.0
    %2567 = vmatprep.subr.mxu0 0.0
    %2568 = vmatpush1.msra.mxu0 0.0
    %2569 = vmatprep.subr.mxu0 0.0
    %2570 = vmatpush1.msra.mxu0 0.0
    %2571 = vmatprep.subr.mxu0 0.0
    %2572 = vmatpush1.msra.mxu0 0.0
    %2573 = vmatprep.subr.mxu0 0.0
    %2574 = vmatpush1.msra.mxu0 %v1942
    %2575 = vmatprep.subr.mxu0 0.0
    %2576 = vmatpush1.msra.mxu0 %v1806
    %2577 = vmatprep.subr.mxu0 0.0
    %2578 = vmatpush1.msra.mxu0 %v1670
    %2579 = vmatprep.subr.mxu0 0.0
    %2580 = vmatpush1.msra.mxu0 %v1534
    %2581 = vmatprep.subr.mxu0 0.0
    %2582 = vmatpush2.msra.mxu0 0.0
    %2583 = vmatprep.subr.mxu0 0.0
    %2584 = vmatpush2.msra.mxu0 0.0
    %2585 = vmatprep.subr.mxu0 0.0
    %2586 = vmatpush2.msra.mxu0 0.0
    %2587 = vmatprep.subr.mxu0 0.0
    %2588 = vmatpush2.msra.mxu0 0.0
    %2589 = vmatprep.subr.mxu0 0.0
    %2590 = vmatpush2.msra.mxu0 0.0
    %2591 = vmatprep.subr.mxu0 0.0
    %2592 = vmatpush2.msra.mxu0 0.0
    %2593 = vmatprep.subr.mxu0 0.0
    %2594 = vmatpush2.msra.mxu0 0.0
    %2595 = vmatprep.subr.mxu0 0.0
    %2596 = vmatpush2.msra.mxu0 0.0
    %2597 = vmatprep.subr.mxu0 0.0
    %2598 = vmatpush2.msra.mxu0 0.0
    %2599 = vmatprep.subr.mxu0 0.0
    %2600 = vmatpush2.msra.mxu0 0.0
    %2601 = vmatprep.subr.mxu0 0.0
    %2602 = vmatpush2.msra.mxu0 0.0
    %2603 = vmatprep.subr.mxu0 0.0
    %2604 = vmatpush2.msra.mxu0 0.0
    %2605 = vmatprep.subr.mxu0 0.0
    %2606 = vmatpush2.msra.mxu0 0.0
    %2607 = vmatprep.subr.mxu0 0.0
    %2608 = vmatpush2.msra.mxu0 0.0
    %2609 = vmatprep.subr.mxu0 0.0
    %2610 = vmatpush2.msra.mxu0 0.0
    %2611 = vmatprep.subr.mxu0 0.0
    %2612 = vmatpush2.msra.mxu0 0.0
    %2613 = vmatprep.mubr.f32.mxu0 0.0
    %2614 = vmatmul.mubr.f32.gmra.mxu0 %v2544
    %v2615 = vpop.f32.mrf.mxu0
    %v2616 = vadd.f32 0.0, %v2615
    %v2617 = vpop.f32.mrf.mxu0
    %2618 = vmatprep.mubr.f32.mxu0 0.0
    %2619 = vmatmul.mubr.f32.gmra.mxu0 %v2547
    %v2620 = vpop.f32.mrf.mxu0
    %v2621 = vadd.f32 0.0, %v2620
    %v2622 = vpop.f32.mrf.mxu0
    %2623 = vdwg.mxu0
    %2624 = vxpose.xlu0.b32.start [1/16] %v39, 128
    %2625 = vxpose.xlu0.b32.cont [2/16] %v40, 128
    %2626 = vxpose.xlu0.b32.cont [3/16] %v41, 128
    %2627 = vxpose.xlu0.b32.cont [4/16] %v42, 128
    %2628 = vxpose.xlu0.b32.cont [5/16] 0.0, 128
    %2629 = vxpose.xlu0.b32.cont [6/16] 0.0, 128
    %2630 = vxpose.xlu0.b32.cont [7/16] 0.0, 128
    %2631 = vxpose.xlu0.b32.cont [8/16] 0.0, 128
    %2632 = vxpose.xlu0.b32.cont [9/16] 0.0, 128
    %2633 = vxpose.xlu0.b32.cont [10/16] 0.0, 128
    %2634 = vxpose.xlu0.b32.cont [11/16] 0.0, 128
    %2635 = vxpose.xlu0.b32.cont [12/16] 0.0, 128
    %2636 = vxpose.xlu0.b32.cont [13/16] 0.0, 128
    %2637 = vxpose.xlu0.b32.cont [14/16] 0.0, 128
    %2638 = vxpose.xlu0.b32.cont [15/16] 0.0, 128
    %2639 = vxpose.xlu0.b32.end [16/16] 0.0, 128
    %v2640 = vpop.trf.xlu0
    %v2641 = vpop.trf.xlu0
    %v2642 = vpop.trf.xlu0
    %v2643 = vpop.trf.xlu0
    %v2644 = vpop.trf.xlu0
    %v2645 = vpop.trf.xlu0
    %v2646 = vpop.trf.xlu0
    %v2647 = vpop.trf.xlu0
    %v2648 = vpop.trf.xlu0
    %v2649 = vpop.trf.xlu0
    %v2650 = vpop.trf.xlu0
    %v2651 = vpop.trf.xlu0
    %v2652 = vpop.trf.xlu0
    %v2653 = vpop.trf.xlu0
    %v2654 = vpop.trf.xlu0
    %v2655 = vpop.trf.xlu0
    %v2657 = vsel %vm1977, %v2640, 0
    %v2660 = vsel %vm1977, %v2641, 0
    %2662 = vmatprep.subr.mxu0 0.0
    %2663 = vmatpush1.msra.mxu0 0.0
    %2664 = vmatprep.subr.mxu0 0.0
    %2665 = vmatpush1.msra.mxu0 0.0
    %2666 = vmatprep.subr.mxu0 0.0
    %2667 = vmatpush1.msra.mxu0 0.0
    %2668 = vmatprep.subr.mxu0 0.0
    %2669 = vmatpush1.msra.mxu0 0.0
    %2670 = vmatprep.subr.mxu0 0.0
    %2671 = vmatpush1.msra.mxu0 0.0
    %2672 = vmatprep.subr.mxu0 0.0
    %2673 = vmatpush1.msra.mxu0 0.0
    %2674 = vmatprep.subr.mxu0 0.0
    %2675 = vmatpush1.msra.mxu0 0.0
    %2676 = vmatprep.subr.mxu0 0.0
    %2677 = vmatpush1.msra.mxu0 0.0
    %2678 = vmatprep.subr.mxu0 0.0
    %2679 = vmatpush1.msra.mxu0 0.0
    %2680 = vmatprep.subr.mxu0 0.0
    %2681 = vmatpush1.msra.mxu0 0.0
    %2682 = vmatprep.subr.mxu0 0.0
    %2683 = vmatpush1.msra.mxu0 0.0
    %2684 = vmatprep.subr.mxu0 0.0
    %2685 = vmatpush1.msra.mxu0 0.0
    %2686 = vmatprep.subr.mxu0 0.0
    %2687 = vmatpush1.msra.mxu0 %v1943
    %2688 = vmatprep.subr.mxu0 0.0
    %2689 = vmatpush1.msra.mxu0 %v1807
    %2690 = vmatprep.subr.mxu0 0.0
    %2691 = vmatpush1.msra.mxu0 %v1671
    %2692 = vmatprep.subr.mxu0 0.0
    %2693 = vmatpush1.msra.mxu0 %v1535
    %2694 = vmatprep.subr.mxu0 0.0
    %2695 = vmatpush2.msra.mxu0 0.0
    %2696 = vmatprep.subr.mxu0 0.0
    %2697 = vmatpush2.msra.mxu0 0.0
    %2698 = vmatprep.subr.mxu0 0.0
    %2699 = vmatpush2.msra.mxu0 0.0
    %2700 = vmatprep.subr.mxu0 0.0
    %2701 = vmatpush2.msra.mxu0 0.0
    %2702 = vmatprep.subr.mxu0 0.0
    %2703 = vmatpush2.msra.mxu0 0.0
    %2704 = vmatprep.subr.mxu0 0.0
    %2705 = vmatpush2.msra.mxu0 0.0
    %2706 = vmatprep.subr.mxu0 0.0
    %2707 = vmatpush2.msra.mxu0 0.0
    %2708 = vmatprep.subr.mxu0 0.0
    %2709 = vmatpush2.msra.mxu0 0.0
    %2710 = vmatprep.subr.mxu0 0.0
    %2711 = vmatpush2.msra.mxu0 0.0
    %2712 = vmatprep.subr.mxu0 0.0
    %2713 = vmatpush2.msra.mxu0 0.0
    %2714 = vmatprep.subr.mxu0 0.0
    %2715 = vmatpush2.msra.mxu0 0.0
    %2716 = vmatprep.subr.mxu0 0.0
    %2717 = vmatpush2.msra.mxu0 0.0
    %2718 = vmatprep.subr.mxu0 0.0
    %2719 = vmatpush2.msra.mxu0 0.0
    %2720 = vmatprep.subr.mxu0 0.0
    %2721 = vmatpush2.msra.mxu0 0.0
    %2722 = vmatprep.subr.mxu0 0.0
    %2723 = vmatpush2.msra.mxu0 0.0
    %2724 = vmatprep.subr.mxu0 0.0
    %2725 = vmatpush2.msra.mxu0 0.0
    %2726 = vmatprep.mubr.f32.mxu0 0.0
    %2727 = vmatmul.mubr.f32.gmra.mxu0 %v2657
    %v2728 = vpop.f32.mrf.mxu0
    %v2729 = vadd.f32 0.0, %v2728
    %v2730 = vpop.f32.mrf.mxu0
    %2731 = vmatprep.mubr.f32.mxu0 0.0
    %2732 = vmatmul.mubr.f32.gmra.mxu0 %v2660
    %v2733 = vpop.f32.mrf.mxu0
    %v2734 = vadd.f32 0.0, %v2733
    %v2735 = vpop.f32.mrf.mxu0
    %2736 = vdwg.mxu0
    %2737 = vxpose.xlu0.b32.start [1/16] %v43, 128
    %2738 = vxpose.xlu0.b32.cont [2/16] %v44, 128
    %2739 = vxpose.xlu0.b32.cont [3/16] %v45, 128
    %2740 = vxpose.xlu0.b32.cont [4/16] %v46, 128
    %2741 = vxpose.xlu0.b32.cont [5/16] 0.0, 128
    %2742 = vxpose.xlu0.b32.cont [6/16] 0.0, 128
    %2743 = vxpose.xlu0.b32.cont [7/16] 0.0, 128
    %2744 = vxpose.xlu0.b32.cont [8/16] 0.0, 128
    %2745 = vxpose.xlu0.b32.cont [9/16] 0.0, 128
    %2746 = vxpose.xlu0.b32.cont [10/16] 0.0, 128
    %2747 = vxpose.xlu0.b32.cont [11/16] 0.0, 128
    %2748 = vxpose.xlu0.b32.cont [12/16] 0.0, 128
    %2749 = vxpose.xlu0.b32.cont [13/16] 0.0, 128
    %2750 = vxpose.xlu0.b32.cont [14/16] 0.0, 128
    %2751 = vxpose.xlu0.b32.cont [15/16] 0.0, 128
    %2752 = vxpose.xlu0.b32.end [16/16] 0.0, 128
    %v2753 = vpop.trf.xlu0
    %v2754 = vpop.trf.xlu0
    %v2755 = vpop.trf.xlu0
    %v2756 = vpop.trf.xlu0
    %v2757 = vpop.trf.xlu0
    %v2758 = vpop.trf.xlu0
    %v2759 = vpop.trf.xlu0
    %v2760 = vpop.trf.xlu0
    %v2761 = vpop.trf.xlu0
    %v2762 = vpop.trf.xlu0
    %v2763 = vpop.trf.xlu0
    %v2764 = vpop.trf.xlu0
    %v2765 = vpop.trf.xlu0
    %v2766 = vpop.trf.xlu0
    %v2767 = vpop.trf.xlu0
    %v2768 = vpop.trf.xlu0
    %v2770 = vsel %vm1977, %v2753, 0
    %v2773 = vsel %vm1977, %v2754, 0
    %2775 = vmatprep.subr.mxu0 0.0
    %2776 = vmatpush1.msra.mxu0 0.0
    %2777 = vmatprep.subr.mxu0 0.0
    %2778 = vmatpush1.msra.mxu0 0.0
    %2779 = vmatprep.subr.mxu0 0.0
    %2780 = vmatpush1.msra.mxu0 0.0
    %2781 = vmatprep.subr.mxu0 0.0
    %2782 = vmatpush1.msra.mxu0 0.0
    %2783 = vmatprep.subr.mxu0 0.0
    %2784 = vmatpush1.msra.mxu0 0.0
    %2785 = vmatprep.subr.mxu0 0.0
    %2786 = vmatpush1.msra.mxu0 0.0
    %2787 = vmatprep.subr.mxu0 0.0
    %2788 = vmatpush1.msra.mxu0 0.0
    %2789 = vmatprep.subr.mxu0 0.0
    %2790 = vmatpush1.msra.mxu0 0.0
    %2791 = vmatprep.subr.mxu0 0.0
    %2792 = vmatpush1.msra.mxu0 0.0
    %2793 = vmatprep.subr.mxu0 0.0
    %2794 = vmatpush1.msra.mxu0 0.0
    %2795 = vmatprep.subr.mxu0 0.0
    %2796 = vmatpush1.msra.mxu0 0.0
    %2797 = vmatprep.subr.mxu0 0.0
    %2798 = vmatpush1.msra.mxu0 0.0
    %2799 = vmatprep.subr.mxu0 0.0
    %2800 = vmatpush1.msra.mxu0 %v1944
    %2801 = vmatprep.subr.mxu0 0.0
    %2802 = vmatpush1.msra.mxu0 %v1808
    %2803 = vmatprep.subr.mxu0 0.0
    %2804 = vmatpush1.msra.mxu0 %v1672
    %2805 = vmatprep.subr.mxu0 0.0
    %2806 = vmatpush1.msra.mxu0 %v1536
    %2807 = vmatprep.subr.mxu0 0.0
    %2808 = vmatpush2.msra.mxu0 0.0
    %2809 = vmatprep.subr.mxu0 0.0
    %2810 = vmatpush2.msra.mxu0 0.0
    %2811 = vmatprep.subr.mxu0 0.0
    %2812 = vmatpush2.msra.mxu0 0.0
    %2813 = vmatprep.subr.mxu0 0.0
    %2814 = vmatpush2.msra.mxu0 0.0
    %2815 = vmatprep.subr.mxu0 0.0
    %2816 = vmatpush2.msra.mxu0 0.0
    %2817 = vmatprep.subr.mxu0 0.0
    %2818 = vmatpush2.msra.mxu0 0.0
    %2819 = vmatprep.subr.mxu0 0.0
    %2820 = vmatpush2.msra.mxu0 0.0
    %2821 = vmatprep.subr.mxu0 0.0
    %2822 = vmatpush2.msra.mxu0 0.0
    %2823 = vmatprep.subr.mxu0 0.0
    %2824 = vmatpush2.msra.mxu0 0.0
    %2825 = vmatprep.subr.mxu0 0.0
    %2826 = vmatpush2.msra.mxu0 0.0
    %2827 = vmatprep.subr.mxu0 0.0
    %2828 = vmatpush2.msra.mxu0 0.0
    %2829 = vmatprep.subr.mxu0 0.0
    %2830 = vmatpush2.msra.mxu0 0.0
    %2831 = vmatprep.subr.mxu0 0.0
    %2832 = vmatpush2.msra.mxu0 0.0
    %2833 = vmatprep.subr.mxu0 0.0
    %2834 = vmatpush2.msra.mxu0 0.0
    %2835 = vmatprep.subr.mxu0 0.0
    %2836 = vmatpush2.msra.mxu0 0.0
    %2837 = vmatprep.subr.mxu0 0.0
    %2838 = vmatpush2.msra.mxu0 0.0
    %2839 = vmatprep.mubr.f32.mxu0 0.0
    %2840 = vmatmul.mubr.f32.gmra.mxu0 %v2770
    %v2841 = vpop.f32.mrf.mxu0
    %v2842 = vadd.f32 0.0, %v2841
    %v2843 = vpop.f32.mrf.mxu0
    %2844 = vmatprep.mubr.f32.mxu0 0.0
    %2845 = vmatmul.mubr.f32.gmra.mxu0 %v2773
    %v2846 = vpop.f32.mrf.mxu0
    %v2847 = vadd.f32 0.0, %v2846
    %v2848 = vpop.f32.mrf.mxu0
    %2849 = vdwg.mxu0
    %2850 = vxpose.xlu0.b32.start [1/16] %v2051, 128
    %2851 = vxpose.xlu0.b32.cont [2/16] %v2056, 128
    %2852 = vxpose.xlu0.b32.cont [3/16] 0.0, 128
    %2853 = vxpose.xlu0.b32.cont [4/16] 0.0, 128
    %2854 = vxpose.xlu0.b32.cont [5/16] 0.0, 128
    %2855 = vxpose.xlu0.b32.cont [6/16] 0.0, 128
    %2856 = vxpose.xlu0.b32.cont [7/16] 0.0, 128
    %2857 = vxpose.xlu0.b32.cont [8/16] 0.0, 128
    %2858 = vxpose.xlu0.b32.cont [9/16] 0.0, 128
    %2859 = vxpose.xlu0.b32.cont [10/16] 0.0, 128
    %2860 = vxpose.xlu0.b32.cont [11/16] 0.0, 128
    %2861 = vxpose.xlu0.b32.cont [12/16] 0.0, 128
    %2862 = vxpose.xlu0.b32.cont [13/16] 0.0, 128
    %2863 = vxpose.xlu0.b32.cont [14/16] 0.0, 128
    %2864 = vxpose.xlu0.b32.cont [15/16] 0.0, 128
    %2865 = vxpose.xlu0.b32.end [16/16] 0.0, 128
    %v2866 = vpop.trf.xlu0
    %v2867 = vpop.trf.xlu0
    %v2868 = vpop.trf.xlu0
    %v2869 = vpop.trf.xlu0
    %v2870 = vpop.trf.xlu0
    %v2871 = vpop.trf.xlu0
    %v2872 = vpop.trf.xlu0
    %v2873 = vpop.trf.xlu0
    %v2874 = vpop.trf.xlu0
    %v2875 = vpop.trf.xlu0
    %v2876 = vpop.trf.xlu0
    %v2877 = vpop.trf.xlu0
    %v2878 = vpop.trf.xlu0
    %v2879 = vpop.trf.xlu0
    %v2880 = vpop.trf.xlu0
    %v2881 = vpop.trf.xlu0
    %2882 = vxpose.xlu0.b32.start [1/16] %v2164, 128
    %2883 = vxpose.xlu0.b32.cont [2/16] %v2169, 128
    %2884 = vxpose.xlu0.b32.cont [3/16] 0.0, 128
    %2885 = vxpose.xlu0.b32.cont [4/16] 0.0, 128
    %2886 = vxpose.xlu0.b32.cont [5/16] 0.0, 128
    %2887 = vxpose.xlu0.b32.cont [6/16] 0.0, 128
    %2888 = vxpose.xlu0.b32.cont [7/16] 0.0, 128
    %2889 = vxpose.xlu0.b32.cont [8/16] 0.0, 128
    %2890 = vxpose.xlu0.b32.cont [9/16] 0.0, 128
    %2891 = vxpose.xlu0.b32.cont [10/16] 0.0, 128
    %2892 = vxpose.xlu0.b32.cont [11/16] 0.0, 128
    %2893 = vxpose.xlu0.b32.cont [12/16] 0.0, 128
    %2894 = vxpose.xlu0.b32.cont [13/16] 0.0, 128
    %2895 = vxpose.xlu0.b32.cont [14/16] 0.0, 128
    %2896 = vxpose.xlu0.b32.cont [15/16] 0.0, 128
    %2897 = vxpose.xlu0.b32.end [16/16] 0.0, 128
    %v2898 = vpop.trf.xlu0
    %v2899 = vpop.trf.xlu0
    %v2900 = vpop.trf.xlu0
    %v2901 = vpop.trf.xlu0
    %v2902 = vpop.trf.xlu0
    %v2903 = vpop.trf.xlu0
    %v2904 = vpop.trf.xlu0
    %v2905 = vpop.trf.xlu0
    %v2906 = vpop.trf.xlu0
    %v2907 = vpop.trf.xlu0
    %v2908 = vpop.trf.xlu0
    %v2909 = vpop.trf.xlu0
    %v2910 = vpop.trf.xlu0
    %v2911 = vpop.trf.xlu0
    %v2912 = vpop.trf.xlu0
    %v2913 = vpop.trf.xlu0
    %2914 = vxpose.xlu0.b32.start [1/16] %v2277, 128
    %2915 = vxpose.xlu0.b32.cont [2/16] %v2282, 128
    %2916 = vxpose.xlu0.b32.cont [3/16] 0.0, 128
    %2917 = vxpose.xlu0.b32.cont [4/16] 0.0, 128
    %2918 = vxpose.xlu0.b32.cont [5/16] 0.0, 128
    %2919 = vxpose.xlu0.b32.cont [6/16] 0.0, 128
    %2920 = vxpose.xlu0.b32.cont [7/16] 0.0, 128
    %2921 = vxpose.xlu0.b32.cont [8/16] 0.0, 128
    %2922 = vxpose.xlu0.b32.cont [9/16] 0.0, 128
    %2923 = vxpose.xlu0.b32.cont [10/16] 0.0, 128
    %2924 = vxpose.xlu0.b32.cont [11/16] 0.0, 128
    %2925 = vxpose.xlu0.b32.cont [12/16] 0.0, 128
    %2926 = vxpose.xlu0.b32.cont [13/16] 0.0, 128
    %2927 = vxpose.xlu0.b32.cont [14/16] 0.0, 128
    %2928 = vxpose.xlu0.b32.cont [15/16] 0.0, 128
    %2929 = vxpose.xlu0.b32.end [16/16] 0.0, 128
    %v2930 = vpop.trf.xlu0
    %v2931 = vpop.trf.xlu0
    %v2932 = vpop.trf.xlu0
    %v2933 = vpop.trf.xlu0
    %v2934 = vpop.trf.xlu0
    %v2935 = vpop.trf.xlu0
    %v2936 = vpop.trf.xlu0
    %v2937 = vpop.trf.xlu0
    %v2938 = vpop.trf.xlu0
    %v2939 = vpop.trf.xlu0
    %v2940 = vpop.trf.xlu0
    %v2941 = vpop.trf.xlu0
    %v2942 = vpop.trf.xlu0
    %v2943 = vpop.trf.xlu0
    %v2944 = vpop.trf.xlu0
    %v2945 = vpop.trf.xlu0
    %2946 = vxpose.xlu0.b32.start [1/16] %v2390, 128
    %2947 = vxpose.xlu0.b32.cont [2/16] %v2395, 128
    %2948 = vxpose.xlu0.b32.cont [3/16] 0.0, 128
    %2949 = vxpose.xlu0.b32.cont [4/16] 0.0, 128
    %2950 = vxpose.xlu0.b32.cont [5/16] 0.0, 128
    %2951 = vxpose.xlu0.b32.cont [6/16] 0.0, 128
    %2952 = vxpose.xlu0.b32.cont [7/16] 0.0, 128
    %2953 = vxpose.xlu0.b32.cont [8/16] 0.0, 128
    %2954 = vxpose.xlu0.b32.cont [9/16] 0.0, 128
    %2955 = vxpose.xlu0.b32.cont [10/16] 0.0, 128
    %2956 = vxpose.xlu0.b32.cont [11/16] 0.0, 128
    %2957 = vxpose.xlu0.b32.cont [12/16] 0.0, 128
    %2958 = vxpose.xlu0.b32.cont [13/16] 0.0, 128
    %2959 = vxpose.xlu0.b32.cont [14/16] 0.0, 128
    %2960 = vxpose.xlu0.b32.cont [15/16] 0.0, 128
    %2961 = vxpose.xlu0.b32.end [16/16] 0.0, 128
    %v2962 = vpop.trf.xlu0
    %v2963 = vpop.trf.xlu0
    %v2964 = vpop.trf.xlu0
    %v2965 = vpop.trf.xlu0
    %v2966 = vpop.trf.xlu0
    %v2967 = vpop.trf.xlu0
    %v2968 = vpop.trf.xlu0
    %v2969 = vpop.trf.xlu0
    %v2970 = vpop.trf.xlu0
    %v2971 = vpop.trf.xlu0
    %v2972 = vpop.trf.xlu0
    %v2973 = vpop.trf.xlu0
    %v2974 = vpop.trf.xlu0
    %v2975 = vpop.trf.xlu0
    %v2976 = vpop.trf.xlu0
    %v2977 = vpop.trf.xlu0
    %2978 = vxpose.xlu0.b32.start [1/16] %v2503, 128
    %2979 = vxpose.xlu0.b32.cont [2/16] %v2508, 128
    %2980 = vxpose.xlu0.b32.cont [3/16] 0.0, 128
    %2981 = vxpose.xlu0.b32.cont [4/16] 0.0, 128
    %2982 = vxpose.xlu0.b32.cont [5/16] 0.0, 128
    %2983 = vxpose.xlu0.b32.cont [6/16] 0.0, 128
    %2984 = vxpose.xlu0.b32.cont [7/16] 0.0, 128
    %2985 = vxpose.xlu0.b32.cont [8/16] 0.0, 128
    %2986 = vxpose.xlu0.b32.cont [9/16] 0.0, 128
    %2987 = vxpose.xlu0.b32.cont [10/16] 0.0, 128
    %2988 = vxpose.xlu0.b32.cont [11/16] 0.0, 128
    %2989 = vxpose.xlu0.b32.cont [12/16] 0.0, 128
    %2990 = vxpose.xlu0.b32.cont [13/16] 0.0, 128
    %2991 = vxpose.xlu0.b32.cont [14/16] 0.0, 128
    %2992 = vxpose.xlu0.b32.cont [15/16] 0.0, 128
    %2993 = vxpose.xlu0.b32.end [16/16] 0.0, 128
    %v2994 = vpop.trf.xlu0
    %v2995 = vpop.trf.xlu0
    %v2996 = vpop.trf.xlu0
    %v2997 = vpop.trf.xlu0
    %v2998 = vpop.trf.xlu0
    %v2999 = vpop.trf.xlu0
    %v3000 = vpop.trf.xlu0
    %v3001 = vpop.trf.xlu0
    %v3002 = vpop.trf.xlu0
    %v3003 = vpop.trf.xlu0
    %v3004 = vpop.trf.xlu0
    %v3005 = vpop.trf.xlu0
    %v3006 = vpop.trf.xlu0
    %v3007 = vpop.trf.xlu0
    %v3008 = vpop.trf.xlu0
    %v3009 = vpop.trf.xlu0
    %3010 = vxpose.xlu0.b32.start [1/16] %v2616, 128
    %3011 = vxpose.xlu0.b32.cont [2/16] %v2621, 128
    %3012 = vxpose.xlu0.b32.cont [3/16] 0.0, 128
    %3013 = vxpose.xlu0.b32.cont [4/16] 0.0, 128
    %3014 = vxpose.xlu0.b32.cont [5/16] 0.0, 128
    %3015 = vxpose.xlu0.b32.cont [6/16] 0.0, 128
    %3016 = vxpose.xlu0.b32.cont [7/16] 0.0, 128
    %3017 = vxpose.xlu0.b32.cont [8/16] 0.0, 128
    %3018 = vxpose.xlu0.b32.cont [9/16] 0.0, 128
    %3019 = vxpose.xlu0.b32.cont [10/16] 0.0, 128
    %3020 = vxpose.xlu0.b32.cont [11/16] 0.0, 128
    %3021 = vxpose.xlu0.b32.cont [12/16] 0.0, 128
    %3022 = vxpose.xlu0.b32.cont [13/16] 0.0, 128
    %3023 = vxpose.xlu0.b32.cont [14/16] 0.0, 128
    %3024 = vxpose.xlu0.b32.cont [15/16] 0.0, 128
    %3025 = vxpose.xlu0.b32.end [16/16] 0.0, 128
    %v3026 = vpop.trf.xlu0
    %v3027 = vpop.trf.xlu0
    %v3028 = vpop.trf.xlu0
    %v3029 = vpop.trf.xlu0
    %v3030 = vpop.trf.xlu0
    %v3031 = vpop.trf.xlu0
    %v3032 = vpop.trf.xlu0
    %v3033 = vpop.trf.xlu0
    %v3034 = vpop.trf.xlu0
    %v3035 = vpop.trf.xlu0
    %v3036 = vpop.trf.xlu0
    %v3037 = vpop.trf.xlu0
    %v3038 = vpop.trf.xlu0
    %v3039 = vpop.trf.xlu0
    %v3040 = vpop.trf.xlu0
    %v3041 = vpop.trf.xlu0
    %3042 = vxpose.xlu0.b32.start [1/16] %v2729, 128
    %3043 = vxpose.xlu0.b32.cont [2/16] %v2734, 128
    %3044 = vxpose.xlu0.b32.cont [3/16] 0.0, 128
    %3045 = vxpose.xlu0.b32.cont [4/16] 0.0, 128
    %3046 = vxpose.xlu0.b32.cont [5/16] 0.0, 128
    %3047 = vxpose.xlu0.b32.cont [6/16] 0.0, 128
    %3048 = vxpose.xlu0.b32.cont [7/16] 0.0, 128
    %3049 = vxpose.xlu0.b32.cont [8/16] 0.0, 128
    %3050 = vxpose.xlu0.b32.cont [9/16] 0.0, 128
    %3051 = vxpose.xlu0.b32.cont [10/16] 0.0, 128
    %3052 = vxpose.xlu0.b32.cont [11/16] 0.0, 128
    %3053 = vxpose.xlu0.b32.cont [12/16] 0.0, 128
    %3054 = vxpose.xlu0.b32.cont [13/16] 0.0, 128
    %3055 = vxpose.xlu0.b32.cont [14/16] 0.0, 128
    %3056 = vxpose.xlu0.b32.cont [15/16] 0.0, 128
    %3057 = vxpose.xlu0.b32.end [16/16] 0.0, 128
    %v3058 = vpop.trf.xlu0
    %v3059 = vpop.trf.xlu0
    %v3060 = vpop.trf.xlu0
    %v3061 = vpop.trf.xlu0
    %v3062 = vpop.trf.xlu0
    %v3063 = vpop.trf.xlu0
    %v3064 = vpop.trf.xlu0
    %v3065 = vpop.trf.xlu0
    %v3066 = vpop.trf.xlu0
    %v3067 = vpop.trf.xlu0
    %v3068 = vpop.trf.xlu0
    %v3069 = vpop.trf.xlu0
    %v3070 = vpop.trf.xlu0
    %v3071 = vpop.trf.xlu0
    %v3072 = vpop.trf.xlu0
    %v3073 = vpop.trf.xlu0
    %3074 = vxpose.xlu0.b32.start [1/16] %v2842, 128
    %3075 = vxpose.xlu0.b32.cont [2/16] %v2847, 128
    %3076 = vxpose.xlu0.b32.cont [3/16] 0.0, 128
    %3077 = vxpose.xlu0.b32.cont [4/16] 0.0, 128
    %3078 = vxpose.xlu0.b32.cont [5/16] 0.0, 128
    %3079 = vxpose.xlu0.b32.cont [6/16] 0.0, 128
    %3080 = vxpose.xlu0.b32.cont [7/16] 0.0, 128
    %3081 = vxpose.xlu0.b32.cont [8/16] 0.0, 128
    %3082 = vxpose.xlu0.b32.cont [9/16] 0.0, 128
    %3083 = vxpose.xlu0.b32.cont [10/16] 0.0, 128
    %3084 = vxpose.xlu0.b32.cont [11/16] 0.0, 128
    %3085 = vxpose.xlu0.b32.cont [12/16] 0.0, 128
    %3086 = vxpose.xlu0.b32.cont [13/16] 0.0, 128
    %3087 = vxpose.xlu0.b32.cont [14/16] 0.0, 128
    %3088 = vxpose.xlu0.b32.cont [15/16] 0.0, 128
    %3089 = vxpose.xlu0.b32.end [16/16] 0.0, 128
    %v3090 = vpop.trf.xlu0
    %v3091 = vpop.trf.xlu0
    %v3092 = vpop.trf.xlu0
    %v3093 = vpop.trf.xlu0
    %v3094 = vpop.trf.xlu0
    %v3095 = vpop.trf.xlu0
    %v3096 = vpop.trf.xlu0
    %v3097 = vpop.trf.xlu0
    %v3098 = vpop.trf.xlu0
    %v3099 = vpop.trf.xlu0
    %v3100 = vpop.trf.xlu0
    %v3101 = vpop.trf.xlu0
    %v3102 = vpop.trf.xlu0
    %v3103 = vpop.trf.xlu0
    %v3104 = vpop.trf.xlu0
    %v3105 = vpop.trf.xlu0
    %v3106 = vcombine.low %v2866, %v2930
    %v3108 = vunpack.c.l.s4 1983009808
    %v3109 = vunpack.c.0.s8 %v3108
    %v3110 = vlaneseq
    %v3111 = vshrl.u32 %v3110, 7
    %v3112 = vsub.s32 %v3109, %v3111
    %v3113 = vrot.slane %v3106, %v3112
    %v3114 = vcombine.low %v2898, %v2962
    %v3116 = vunpack.c.l.s4 1983009808
    %v3117 = vunpack.c.0.s8 %v3116
    %v3118 = vlaneseq
    %v3119 = vshrl.u32 %v3118, 7
    %v3120 = vsub.s32 %v3117, %v3119
    %v3121 = vrot.slane %v3114, %v3120
    %v3122 = vcombine.low %v2994, %v3058
    %v3124 = vunpack.c.l.s4 1983009808
    %v3125 = vunpack.c.0.s8 %v3124
    %v3126 = vlaneseq
    %v3127 = vshrl.u32 %v3126, 7
    %v3128 = vsub.s32 %v3125, %v3127
    %v3129 = vrot.slane %v3122, %v3128
    %v3130 = vcombine.low %v3026, %v3090
    %v3132 = vunpack.c.l.s4 1983009808
    %v3133 = vunpack.c.0.s8 %v3132
    %v3134 = vlaneseq
    %v3135 = vshrl.u32 %v3134, 7
    %v3136 = vsub.s32 %v3133, %v3135
    %v3137 = vrot.slane %v3130, %v3136
    %v3138 = vcombine.low %v3113, %v3121
    %v3140 = vunpack.c.l.s4 1934713408
    %v3141 = vunpack.c.0.s8 %v3140
    %v3142 = vlaneseq
    %v3143 = vshrl.u32 %v3142, 7
    %v3144 = vsub.s32 %v3141, %v3143
    %v3145 = vrot.slane %v3138, %v3144
    %v3146 = vcombine.low %v3129, %v3137
    %v3148 = vunpack.c.l.s4 1934713408
    %v3149 = vunpack.c.0.s8 %v3148
    %v3150 = vlaneseq
    %v3151 = vshrl.u32 %v3150, 7
    %v3152 = vsub.s32 %v3149, %v3151
    %v3153 = vrot.slane %v3146, %v3152
    %v3154 = vcombine.low %v3145, %v3153
    %v3155 = vcombine.high %v3145, %v3153
    %v3156 = vld [vmem:[%s2] sm:$0xff]
    %v3157 = vadd.f32 %v3154, %v3156
    %v3158 = vadd.f32 %v3155, %v3156
    %vm3159 = vcmask 130048
    %3160 = vst.msk [vmem:[#allocation2] sm:$0xff] %vm3159, %v3157
    %3161 = vst.msk [vmem:[#allocation2 + $0x8] sm:$0xff] %vm3159, %v3158
    // Predicated region
    $region14: #{tpu_custom_call.1} parent=1 // pred_check
      _
    $region15: #{tpu_custom_call.1} parent=1 // pred_check_branch
      %3163 = sbr.rel (0) target = $region17
    $region16: #{tpu_custom_call.1} parent=1 // pred_region
      %s3165 = ssub.s32 256, 256
      %3166 = vsyncadd [#allocation3], %s3165
      %s3167 = sshll.u32 [#allocation2], 4
      %s3168 = int_to_ptr.vmem [resolvable:$true] %s3167
      %3173 = dma.vmem_to_hbm [thread:$0]  %s3168, 256, %s3, [#allocation3], 128, 128, 8
    $region17: #{tpu_custom_call.1} parent=1 // pred_fallthru
      _
    // Predicated region
    $region18: #{tpu_custom_call.1} parent=1 // pred_check
      _
    $region19: #{tpu_custom_call.1} parent=1 // pred_check_branch
      %3175 = sbr.rel (0) target = $region21
    $region20: #{tpu_custom_call.1} parent=1 // pred_region
      %3176 = dma.done [#allocation3], 256
    $region21: #{tpu_custom_call.1} parent=1 // pred_fallthru
      _
    %3177 = vsyncpa [#allocation3], 1

</llo_original>
